<compile_context>
chip_gen: v7x
topology: tpu7x:2x2x1
jax: 0.10.0
libtpu: 0.0.40
codegen_flags: <defaults>
</compile_context>

<pallas_src>
import functools
import math

import jax
import jax.numpy as jnp
import numpy as np
from jax.experimental import pallas as pl
from jax.experimental.pallas import tpu as pltpu

NEG_BIG = -1e30   # finite "-inf" for additive masks


# ----------------------------- shared helpers ------------------------------

def _layer_norm(v, g, b, eps=1e-5):
    # v: (R, D) f32, g/b: (1, D)
    mu = jnp.mean(v, axis=-1, keepdims=True)
    c = v - mu
    var = jnp.mean(c * c, axis=-1, keepdims=True)
    return c * jax.lax.rsqrt(var + eps) * g + b


# ------------------------------- the kernel --------------------------------

def decoder_layer_kernel(
    x_ref, enc_ref, smask_ref, cmask_ref, drop_ref,
    w_in1_ref, b_in1_ref, w_out1_ref, b_out1_ref,
    w_q2_ref, b_q2_ref, w_kv2_ref, b_kv2_ref, w_out2_ref, b_out2_ref,
    w_l1_ref, b_l1_ref, w_l2_ref, b_l2_ref,
    g1_ref, be1_ref, g2_ref, be2_ref, g3_ref, be3_ref, g4_ref, be4_ref,
    out_ref, *, num_heads, out_chunks):
    f32 = jnp.float32
    bf16 = jnp.bfloat16

    x = x_ref[...]            # (R, E) f32, R = B*S, batch-major rows
    enc = enc_ref[...]        # (Rs, E) f32, Rs = B*Ssrc
    E = x.shape[-1]
    Dh = E // num_heads

    def mm(act_f32, w_ref):
        # bf16 MXU operands (weights are pre-cast on host), f32 accumulation.
        return jnp.dot(act_f32.astype(bf16), w_ref[...],
                       preferred_element_type=f32)

    def attention(q, k, v, add_mask, w_out_ref, b_out):
        # q: (Rq, E), k/v: (Rk, E) f32 (q already carries the 1/sqrt(Dh) scale)
        # add_mask: (Rq, Rk) additive f32 (block-diagonal over the batch).
        qb, kb, vb = q.astype(bf16), k.astype(bf16), v.astype(bf16)
        heads = []
        for h in range(num_heads):
            lo = h * Dh
            qh = qb[:, lo:lo + Dh]
            kh = kb[:, lo:lo + Dh]
            vh = vb[:, lo:lo + Dh]
            # q @ k^T without materializing a transpose.
            s = jax.lax.dot_general(qh, kh, (((1,), (1,)), ((), ())),
                                    preferred_element_type=f32)
            s = s + add_mask
            m = jnp.max(s, axis=-1, keepdims=True)
            e = jnp.exp(s - m)
            denom = jnp.sum(e, axis=-1, keepdims=True)
            p = e * pl.reciprocal(denom, approx=True)
            heads.append(jnp.dot(p.astype(bf16), vh,
                                 preferred_element_type=f32))
        o = jnp.concatenate(heads, axis=-1)         # (Rq, E)
        return mm(o, w_out_ref) + b_out             # single output projection

    # ---- masked multi-head self-attention + residual + norm1 ----
    qkv = mm(x, w_in1_ref) + b_in1_ref[...]         # fused QKV: (R, 3E)
    sa = attention(qkv[:, 0:E], qkv[:, E:2 * E], qkv[:, 2 * E:3 * E],
                   smask_ref[...], w_out1_ref, b_out1_ref[...])
    h1 = _layer_norm(sa + x, g1_ref[...], be1_ref[...])

    # ---- encoder-decoder attention + residual + norm2 ----
    q2 = mm(h1, w_q2_ref) + b_q2_ref[...]           # (R, E)
    kv = mm(enc, w_kv2_ref) + b_kv2_ref[...]        # fused KV: (Rs, 2E)
    ca = attention(q2, kv[:, 0:E], kv[:, E:2 * E],
                   cmask_ref[...], w_out2_ref, b_out2_ref[...])
    h2 = _layer_norm(ca + h1, g2_ref[...], be2_ref[...])

    # ---- feed-forward: linear1 -> relu -> norm3 -> dropout -> linear2 ----
    ff = mm(h2, w_l1_ref) + b_l1_ref[...]
    ff = jnp.maximum(ff, 0.0)
    ff = _layer_norm(ff, g3_ref[...], be3_ref[...])
    ff = ff * drop_ref[...]
    ff = mm(ff, w_l2_ref) + b_l2_ref[...]

    out = _layer_norm(ff + h2, g4_ref[...], be4_ref[...])   # (R, E) f32

    # ---- lane-dense writeback ----
    if out_chunks > 1:
        rows = out.shape[0] // out_chunks
        out_wide = jnp.concatenate(
            [out[c * rows:(c + 1) * rows, :] for c in range(out_chunks)],
            axis=1)                                  # (rows, out_chunks*E)
        out_ref[...] = out_wide.astype(out_ref.dtype)
    else:
        out_ref[...] = out.astype(out_ref.dtype)


# --------------------------- host-side weight prep --------------------------

PREP_ORDER = ("w_in1", "b_in1", "w_out1", "b_out1",
              "w_q2", "b_q2", "w_kv2", "b_kv2", "w_out2", "b_out2",
              "w_l1", "b_l1", "w_l2", "b_l2",
              "g1", "be1", "g2", "be2", "g3", "be3", "g4", "be4")


def _prepare_params(params, num_heads):
    """Pre-transpose weights, fold the attention scale into Wq/bq, cast the
    matmul weights to bf16 (biases / LayerNorm params stay f32)."""
    E = params["w_out1"].shape[0]
    scale = 1.0 / math.sqrt(E // num_heads)
    bf16 = jnp.bfloat16
    w_in1, b_in1 = params["w_in1"], params["b_in1"]
    w_in2, b_in2 = params["w_in2"], params["b_in2"]
    return {
        # self-attention: packed (E, 3E) with Wq columns pre-scaled
        "w_in1": jnp.concatenate([w_in1[:E].T * scale, w_in1[E:].T],
                                 axis=1).astype(bf16),
        "b_in1": jnp.concatenate([b_in1[:, :E] * scale, b_in1[:, E:]], axis=1),
        "w_out1": params["w_out1"].T.astype(bf16),
        "b_out1": params["b_out1"],
        # cross-attention: separate Q (decoder side) and packed KV (encoder side)
        "w_q2": (w_in2[:E].T * scale).astype(bf16),
        "b_q2": b_in2[:, :E] * scale,
        "w_kv2": w_in2[E:].T.astype(bf16),
        "b_kv2": b_in2[:, E:],
        "w_out2": params["w_out2"].T.astype(bf16),
        "b_out2": params["b_out2"],
        # feed-forward
        "w_l1": params["w_l1"].T.astype(bf16),
        "b_l1": params["b_l1"],
        "w_l2": params["w_l2"].T.astype(bf16),
        "b_l2": params["b_l2"],
        # layer norms
        "g1": params["g1"], "be1": params["be1"],
        "g2": params["g2"], "be2": params["be2"],
        "g3": params["g3"], "be3": params["be3"],
        "g4": params["g4"], "be4": params["be4"],
    }


# --------------------------------- wrapper ----------------------------------

def decoder_layer_pallas(x_sbe, enc_sbe, trg_key_padding_mask,
                         src_key_padding_mask, trg_attn_mask, params,
                         num_heads, dropout_keep_mask):
    """x_sbe/enc_sbe: [S, B, E] (PyTorch layout). key_padding_masks: bool [B, S*]
    (True = ignore). trg_attn_mask: additive float [S, S]. Returns [S, B, E]."""
    S, B, E = x_sbe.shape
    Ss = enc_sbe.shape[0]
    Hff = params["b_l1"].shape[-1]
    assert E % num_heads == 0

    f32 = jnp.float32
    # batch-major flat activations (cheap wrapper-side transposes at these sizes)
    x2 = jnp.transpose(x_sbe, (1, 0, 2)).reshape(B * S, E).astype(f32)
    enc2 = jnp.transpose(enc_sbe, (1, 0, 2)).reshape(B * Ss, E).astype(f32)
    drop2 = dropout_keep_mask.astype(f32).reshape(B * S, Hff)

    # additive masks, finite -1e30, block-diagonal over the batch
    amask = jnp.maximum(trg_attn_mask.astype(f32), NEG_BIG)            # (S, S)
    tk = jnp.where(trg_key_padding_mask, NEG_BIG, 0.0).astype(f32)     # (B, S)
    sk = jnp.where(src_key_padding_mask, NEG_BIG, 0.0).astype(f32)     # (B, Ss)
    bi = jnp.arange(B)
    same_b = bi[:, None, None, None] == bi[None, None, :, None]        # (B,1,B,1)
    self_block = amask[None, :, :] + tk[:, None, :]                    # (B,S,S)
    self_mask = jnp.where(same_b, self_block[:, :, None, :], NEG_BIG)  # (B,S,B,S)
    self_mask = self_mask.reshape(B * S, B * S)
    cross_mask = jnp.where(same_b, sk[:, None, None, :], NEG_BIG)      # (B,1,B,Ss)
    cross_mask = jnp.broadcast_to(cross_mask, (B, S, B, Ss)).reshape(B * S, B * Ss)

    # lane-dense output layout: (B*S/(128/E), 128) when it divides evenly
    LANE = 128
    if E <= LANE and LANE % E == 0 and (B * S) % (LANE // E) == 0 and B * S >= LANE // E:
        out_chunks = LANE // E
    else:
        out_chunks = 1
    rows_out = (B * S) // out_chunks
    out_shape2d = (rows_out, out_chunks * E)

    prep = _prepare_params(params, num_heads)
    weights = [prep[k] for k in PREP_ORDER]
    varying = [x2, enc2, self_mask, cross_mask, drop2]

    def full_spec(a):
        return pl.BlockSpec(a.shape, lambda i: (0, 0))

    in_specs = [full_spec(a) for a in varying] + [full_spec(w) for w in weights]

    out2d = pl.pallas_call(
        functools.partial(decoder_layer_kernel, num_heads=num_heads,
                          out_chunks=out_chunks),
        out_shape=jax.ShapeDtypeStruct(out_shape2d, f32),
        grid_spec=pltpu.PrefetchScalarGridSpec(
            num_scalar_prefetch=0,
            grid=(1,),
            in_specs=in_specs,
            out_specs=pl.BlockSpec(out_shape2d, lambda i: (0, 0)),
        ),
        compiler_params=pltpu.CompilerParams(
            dimension_semantics=("arbitrary",)),
    )(*varying, *weights)

    # unscramble the lane-dense slab back to (B*S, E), then to [S, B, E]
    if out_chunks > 1:
        out_flat = (out2d.reshape(rows_out, out_chunks, E)
                    .transpose(1, 0, 2)
                    .reshape(B * S, E))
    else:
        out_flat = out2d
    return jnp.transpose(out_flat.reshape(B, S, E), (1, 0, 2))


# --------------------------- pure-JAX reference -----------------------------

def decoder_layer_ref(x_sbe, enc_sbe, tkpm, skpm, amask, params, num_heads,
                      drop_keep):
    """Independent reference from the ORIGINAL (PyTorch-layout) parameters,
    mirroring the kernel's precision policy (bf16 matmul operands, f32 acc)."""
    bf16, f32 = jnp.bfloat16, jnp.float32

    def dot(a, b):
        return jnp.dot(a.astype(bf16), b.astype(bf16),
                       preferred_element_type=f32)

    def mha(q_in, k_in, v_in, w_in, b_in, w_out, b_out, add_mask):
        E = q_in.shape[-1]
        Dh = E // num_heads
        scale = 1.0 / math.sqrt(Dh)
        q = (dot(q_in, w_in[:E].T) + b_in[:, :E]) * scale
        k = dot(k_in, w_in[E:2 * E].T) + b_in[:, E:2 * E]
        v = dot(v_in, w_in[2 * E:].T) + b_in[:, 2 * E:]
        outs = []
        for h in range(num_heads):
            lo = h * Dh
            s = dot(q[:, lo:lo + Dh], k[:, lo:lo + Dh].T) + add_mask
            p = jax.nn.softmax(s, axis=-1)
            outs.append(dot(p, v[:, lo:lo + Dh]))
        o = jnp.concatenate(outs, axis=-1)
        return dot(o, w_out.T) + b_out

    def one(xb, eb, tkb, skb, db):
        self_mask = jnp.maximum(amask.astype(f32), NEG_BIG) + tkb
        sa = mha(xb, xb, xb, params["w_in1"], params["b_in1"],
                 params["w_out1"], params["b_out1"], self_mask)
        h1 = _layer_norm(sa + xb, params["g1"], params["be1"])
        ca = mha(h1, eb, eb, params["w_in2"], params["b_in2"],
                 params["w_out2"], params["b_out2"], skb)
        h2 = _layer_norm(ca + h1, params["g2"], params["be2"])
        ff = dot(h2, params["w_l1"].T) + params["b_l1"]
        ff = jnp.maximum(ff, 0.0)
        ff = _layer_norm(ff, params["g3"], params["be3"])
        ff = ff * db
        ff = dot(ff, params["w_l2"].T) + params["b_l2"]
        return _layer_norm(ff + h2, params["g4"], params["be4"])

    x = jnp.transpose(x_sbe, (1, 0, 2)).astype(f32)
    enc = jnp.transpose(enc_sbe, (1, 0, 2)).astype(f32)
    tk = jnp.where(tkpm, NEG_BIG, 0.0)[:, None, :].astype(f32)
    sk = jnp.where(skpm, NEG_BIG, 0.0)[:, None, :].astype(f32)
    out = jax.vmap(one)(x, enc, tk, sk, drop_keep.astype(f32))
    return jnp.transpose(out, (1, 0, 2))


# ----------------------------------- main ------------------------------------

if __name__ == "__main__":
    S, B, E = 8, 2, 32          # tgt seq, batch, embed_dim
    Ss = 8                      # src seq
    Hff = 64                    # hidden_dim
    NH = 4                      # num_heads

    key = jax.random.PRNGKey(0)
    ks = jax.random.split(key, 16)

    def u(k, shape, fan_in):
        lim = 1.0 / math.sqrt(fan_in)
        return jax.random.uniform(k, shape, jnp.float32, -lim, lim)

    params = {
        # masked self-attention (mmh_self_attn), PyTorch packed in_proj layout
        "w_in1": u(ks[0], (3 * E, E), E), "b_in1": u(ks[1], (1, 3 * E), E),
        "w_out1": u(ks[2], (E, E), E), "b_out1": u(ks[3], (1, E), E),
        # encoder-decoder attention (mh_self_attn)
        "w_in2": u(ks[4], (3 * E, E), E), "b_in2": u(ks[5], (1, 3 * E), E),
        "w_out2": u(ks[6], (E, E), E), "b_out2": u(ks[7], (1, E), E),
        # feed-forward
        "w_l1": u(ks[8], (Hff, E), E), "b_l1": u(ks[9], (1, Hff), E),
        "w_l2": u(ks[10], (E, Hff), Hff), "b_l2": u(ks[11], (1, E), Hff),
        # layer norms (PyTorch default affine init: gamma=1, beta=0)
        "g1": jnp.ones((1, E), jnp.float32), "be1": jnp.zeros((1, E), jnp.float32),
        "g2": jnp.ones((1, E), jnp.float32), "be2": jnp.zeros((1, E), jnp.float32),
        "g3": jnp.ones((1, Hff), jnp.float32), "be3": jnp.zeros((1, Hff), jnp.float32),
        "g4": jnp.ones((1, E), jnp.float32), "be4": jnp.zeros((1, E), jnp.float32),
    }

    # Inputs in PyTorch layout [S, B, E]
    x = jax.random.normal(ks[12], (S, B, E), jnp.float32)
    enc_out = jax.random.normal(ks[13], (Ss, B, E), jnp.float32)

    # key_padding_masks: True = ignore. Only pad the last position so no query
    # row has every key masked.
    trg_kpm = jnp.zeros((B, S), bool).at[:, -1].set(True)
    src_kpm = jnp.zeros((B, Ss), bool).at[:, -1].set(True)

    # causal additive attn mask (PyTorch convention: -inf above the diagonal;
    # the wrapper clamps it to a finite -1e30)
    trg_attn_mask = jnp.where(
        jnp.triu(jnp.ones((S, S), bool), k=1), -jnp.inf, 0.0
    ).astype(jnp.float32)

    # dropout(p=0.1): deterministic precomputed keep-mask (dropout=True branch)
    # TODO(synk): torch RNG semantics for nn.Dropout are not reproducible here;
    # the random keep-mask is supplied as an explicit input instead.
    keep = jax.random.bernoulli(ks[14], 0.9, (B, S, Hff)).astype(jnp.float32) / 0.9

    out = decoder_layer_pallas(x, enc_out, trg_kpm, src_kpm, trg_attn_mask,
                               params, NH, keep)
    out = jax.block_until_ready(out)

    ref = decoder_layer_ref(x, enc_out, trg_kpm, src_kpm, trg_attn_mask,
                            params, NH, keep)
    np.testing.assert_allclose(np.asarray(out), np.asarray(ref),
                               rtol=2e-2, atol=2e-2)
    assert out.shape == (S, B, E)
    print("KERNEL_OK")
</pallas_src>

<mosaic_0001>
module attributes {stable_mosaic.version = 11 : i64} {
  func.func @decoder_layer_kernel(%arg0: i32, %arg1: memref<16x32xf32, #tpu.memory_space<vmem>>, %arg2: memref<16x32xf32, #tpu.memory_space<vmem>>, %arg3: memref<16x16xf32, #tpu.memory_space<vmem>>, %arg4: memref<16x16xf32, #tpu.memory_space<vmem>>, %arg5: memref<16x64xf32, #tpu.memory_space<vmem>>, %arg6: memref<32x96xbf16, #tpu.memory_space<vmem>>, %arg7: memref<1x96xf32, #tpu.memory_space<vmem>>, %arg8: memref<32x32xbf16, #tpu.memory_space<vmem>>, %arg9: memref<1x32xf32, #tpu.memory_space<vmem>>, %arg10: memref<32x32xbf16, #tpu.memory_space<vmem>>, %arg11: memref<1x32xf32, #tpu.memory_space<vmem>>, %arg12: memref<32x64xbf16, #tpu.memory_space<vmem>>, %arg13: memref<1x64xf32, #tpu.memory_space<vmem>>, %arg14: memref<32x32xbf16, #tpu.memory_space<vmem>>, %arg15: memref<1x32xf32, #tpu.memory_space<vmem>>, %arg16: memref<32x64xbf16, #tpu.memory_space<vmem>>, %arg17: memref<1x64xf32, #tpu.memory_space<vmem>>, %arg18: memref<64x32xbf16, #tpu.memory_space<vmem>>, %arg19: memref<1x32xf32, #tpu.memory_space<vmem>>, %arg20: memref<1x32xf32, #tpu.memory_space<vmem>>, %arg21: memref<1x32xf32, #tpu.memory_space<vmem>>, %arg22: memref<1x32xf32, #tpu.memory_space<vmem>>, %arg23: memref<1x32xf32, #tpu.memory_space<vmem>>, %arg24: memref<1x64xf32, #tpu.memory_space<vmem>>, %arg25: memref<1x64xf32, #tpu.memory_space<vmem>>, %arg26: memref<1x32xf32, #tpu.memory_space<vmem>>, %arg27: memref<1x32xf32, #tpu.memory_space<vmem>>, %arg28: memref<4x128xf32, #tpu.memory_space<vmem>>) attributes {dimension_semantics = [#tpu.dimension_semantics<arbitrary>], iteration_bounds = array<i64: 1>, scalar_prefetch = 0 : i64, scratch_operands = 0 : i64, tpu.core_type = #tpu.core_type<tc>, window_params = [{pipeline_mode = #tpu.pipeline_mode<synchronous>, transform_indices = @transform_0, window_bounds = array<i64: 16, 32>}, {pipeline_mode = #tpu.pipeline_mode<synchronous>, transform_indices = @transform_1, window_bounds = array<i64: 16, 32>}, {pipeline_mode = #tpu.pipeline_mode<synchronous>, transform_indices = @transform_2, window_bounds = array<i64: 16, 16>}, {pipeline_mode = #tpu.pipeline_mode<synchronous>, transform_indices = @transform_3, window_bounds = array<i64: 16, 16>}, {pipeline_mode = #tpu.pipeline_mode<synchronous>, transform_indices = @transform_4, window_bounds = array<i64: 16, 64>}, {pipeline_mode = #tpu.pipeline_mode<synchronous>, transform_indices = @transform_5, window_bounds = array<i64: 32, 96>}, {pipeline_mode = #tpu.pipeline_mode<synchronous>, transform_indices = @transform_6, window_bounds = array<i64: 1, 96>}, {pipeline_mode = #tpu.pipeline_mode<synchronous>, transform_indices = @transform_7, window_bounds = array<i64: 32, 32>}, {pipeline_mode = #tpu.pipeline_mode<synchronous>, transform_indices = @transform_8, window_bounds = array<i64: 1, 32>}, {pipeline_mode = #tpu.pipeline_mode<synchronous>, transform_indices = @transform_9, window_bounds = array<i64: 32, 32>}, {pipeline_mode = #tpu.pipeline_mode<synchronous>, transform_indices = @transform_10, window_bounds = array<i64: 1, 32>}, {pipeline_mode = #tpu.pipeline_mode<synchronous>, transform_indices = @transform_11, window_bounds = array<i64: 32, 64>}, {pipeline_mode = #tpu.pipeline_mode<synchronous>, transform_indices = @transform_12, window_bounds = array<i64: 1, 64>}, {pipeline_mode = #tpu.pipeline_mode<synchronous>, transform_indices = @transform_13, window_bounds = array<i64: 32, 32>}, {pipeline_mode = #tpu.pipeline_mode<synchronous>, transform_indices = @transform_14, window_bounds = array<i64: 1, 32>}, {pipeline_mode = #tpu.pipeline_mode<synchronous>, transform_indices = @transform_15, window_bounds = array<i64: 32, 64>}, {pipeline_mode = #tpu.pipeline_mode<synchronous>, transform_indices = @transform_16, window_bounds = array<i64: 1, 64>}, {pipeline_mode = #tpu.pipeline_mode<synchronous>, transform_indices = @transform_17, window_bounds = array<i64: 64, 32>}, {pipeline_mode = #tpu.pipeline_mode<synchronous>, transform_indices = @transform_18, window_bounds = array<i64: 1, 32>}, {pipeline_mode = #tpu.pipeline_mode<synchronous>, transform_indices = @transform_19, window_bounds = array<i64: 1, 32>}, {pipeline_mode = #tpu.pipeline_mode<synchronous>, transform_indices = @transform_20, window_bounds = array<i64: 1, 32>}, {pipeline_mode = #tpu.pipeline_mode<synchronous>, transform_indices = @transform_21, window_bounds = array<i64: 1, 32>}, {pipeline_mode = #tpu.pipeline_mode<synchronous>, transform_indices = @transform_22, window_bounds = array<i64: 1, 32>}, {pipeline_mode = #tpu.pipeline_mode<synchronous>, transform_indices = @transform_23, window_bounds = array<i64: 1, 64>}, {pipeline_mode = #tpu.pipeline_mode<synchronous>, transform_indices = @transform_24, window_bounds = array<i64: 1, 64>}, {pipeline_mode = #tpu.pipeline_mode<synchronous>, transform_indices = @transform_25, window_bounds = array<i64: 1, 32>}, {pipeline_mode = #tpu.pipeline_mode<synchronous>, transform_indices = @transform_26, window_bounds = array<i64: 1, 32>}, {pipeline_mode = #tpu.pipeline_mode<synchronous>, transform_indices = @transform_27, window_bounds = array<i64: 4, 128>}]} {
    %c0 = arith.constant 0 : index
    %c0_0 = arith.constant 0 : index
    %0 = vector.load %arg1[%c0, %c0_0] : memref<16x32xf32, #tpu.memory_space<vmem>>, vector<16x32xf32>
    %c0_1 = arith.constant 0 : index
    %c0_2 = arith.constant 0 : index
    %1 = vector.load %arg2[%c0_1, %c0_2] : memref<16x32xf32, #tpu.memory_space<vmem>>, vector<16x32xf32>
    %2 = arith.truncf %0 : vector<16x32xf32> to vector<16x32xbf16>
    %c0_3 = arith.constant 0 : index
    %c0_4 = arith.constant 0 : index
    %3 = vector.load %arg6[%c0_3, %c0_4] : memref<32x96xbf16, #tpu.memory_space<vmem>>, vector<32x96xbf16>
    %cst = arith.constant dense<0.000000e+00> : vector<16x96xf32>
    %4 = tpu.matmul %2, %3, %cst {dimension_numbers = #tpu.dot_dimension_numbers<[1], [0], [0], [1], [0, 0, 1, 1], [], []>} : vector<16x32xbf16>, vector<32x96xbf16>, vector<16x96xf32> -> vector<16x96xf32>
    %c0_5 = arith.constant 0 : index
    %c0_6 = arith.constant 0 : index
    %5 = vector.load %arg7[%c0_5, %c0_6] : memref<1x96xf32, #tpu.memory_space<vmem>>, vector<1x96xf32>
    %6 = vector.broadcast %5 : vector<1x96xf32> to vector<16x96xf32>
    %7 = arith.addf %4, %6 : vector<16x96xf32>
    %8 = vector.extract_strided_slice %7 {offsets = [0, 0], sizes = [16, 32], strides = [1, 1]} : vector<16x96xf32> to vector<16x32xf32>
    %9 = vector.extract_strided_slice %7 {offsets = [0, 32], sizes = [16, 32], strides = [1, 1]} : vector<16x96xf32> to vector<16x32xf32>
    %10 = vector.extract_strided_slice %7 {offsets = [0, 64], sizes = [16, 32], strides = [1, 1]} : vector<16x96xf32> to vector<16x32xf32>
    %c0_7 = arith.constant 0 : index
    %c0_8 = arith.constant 0 : index
    %11 = vector.load %arg3[%c0_7, %c0_8] : memref<16x16xf32, #tpu.memory_space<vmem>>, vector<16x16xf32>
    %c0_9 = arith.constant 0 : index
    %c0_10 = arith.constant 0 : index
    %12 = vector.load %arg9[%c0_9, %c0_10] : memref<1x32xf32, #tpu.memory_space<vmem>>, vector<1x32xf32>
    %13 = arith.truncf %8 : vector<16x32xf32> to vector<16x32xbf16>
    %14 = arith.truncf %9 : vector<16x32xf32> to vector<16x32xbf16>
    %15 = arith.truncf %10 : vector<16x32xf32> to vector<16x32xbf16>
    %16 = vector.extract_strided_slice %13 {offsets = [0, 0], sizes = [16, 8], strides = [1, 1]} : vector<16x32xbf16> to vector<16x8xbf16>
    %17 = vector.extract_strided_slice %14 {offsets = [0, 0], sizes = [16, 8], strides = [1, 1]} : vector<16x32xbf16> to vector<16x8xbf16>
    %18 = vector.extract_strided_slice %15 {offsets = [0, 0], sizes = [16, 8], strides = [1, 1]} : vector<16x32xbf16> to vector<16x8xbf16>
    %cst_11 = arith.constant dense<0.000000e+00> : vector<16x16xf32>
    %19 = tpu.matmul %16, %17, %cst_11 {dimension_numbers = #tpu.dot_dimension_numbers<[1], [1], [0], [0], [0, 0, 1, 0], [], []>} : vector<16x8xbf16>, vector<16x8xbf16>, vector<16x16xf32> -> vector<16x16xf32>
    %20 = arith.addf %19, %11 : vector<16x16xf32>
    %cst_12 = arith.constant dense<0xFF800000> : vector<16xf32>
    %21 = vector.multi_reduction <maximumf>, %20, %cst_12 [1] : vector<16x16xf32> to vector<16xf32>
    %22 = vector.shape_cast %21 : vector<16xf32> to vector<16x1xf32>
    %23 = vector.broadcast %22 : vector<16x1xf32> to vector<16x16xf32>
    %24 = arith.subf %20, %23 : vector<16x16xf32>
    %25 = math.exp %24 : vector<16x16xf32>
    %cst_13 = arith.constant dense<0.000000e+00> : vector<16xf32>
    %26 = vector.multi_reduction <add>, %25, %cst_13 [1] : vector<16x16xf32> to vector<16xf32>
    %27 = vector.shape_cast %26 : vector<16xf32> to vector<16x1xf32>
    %28 = tpu.reciprocal %27 {approx = true} : vector<16x1xf32> -> vector<16x1xf32>
    %29 = vector.broadcast %28 : vector<16x1xf32> to vector<16x16xf32>
    %30 = arith.mulf %25, %29 : vector<16x16xf32>
    %31 = arith.truncf %30 : vector<16x16xf32> to vector<16x16xbf16>
    %cst_14 = arith.constant dense<0.000000e+00> : vector<16x8xf32>
    %32 = tpu.matmul %31, %18, %cst_14 {dimension_numbers = #tpu.dot_dimension_numbers<[1], [0], [0], [1], [0, 0, 1, 1], [], []>} : vector<16x16xbf16>, vector<16x8xbf16>, vector<16x8xf32> -> vector<16x8xf32>
    %33 = vector.extract_strided_slice %13 {offsets = [0, 8], sizes = [16, 8], strides = [1, 1]} : vector<16x32xbf16> to vector<16x8xbf16>
    %34 = vector.extract_strided_slice %14 {offsets = [0, 8], sizes = [16, 8], strides = [1, 1]} : vector<16x32xbf16> to vector<16x8xbf16>
    %35 = vector.extract_strided_slice %15 {offsets = [0, 8], sizes = [16, 8], strides = [1, 1]} : vector<16x32xbf16> to vector<16x8xbf16>
    %cst_15 = arith.constant dense<0.000000e+00> : vector<16x16xf32>
    %36 = tpu.matmul %33, %34, %cst_15 {dimension_numbers = #tpu.dot_dimension_numbers<[1], [1], [0], [0], [0, 0, 1, 0], [], []>} : vector<16x8xbf16>, vector<16x8xbf16>, vector<16x16xf32> -> vector<16x16xf32>
    %37 = arith.addf %36, %11 : vector<16x16xf32>
    %cst_16 = arith.constant dense<0xFF800000> : vector<16xf32>
    %38 = vector.multi_reduction <maximumf>, %37, %cst_16 [1] : vector<16x16xf32> to vector<16xf32>
    %39 = vector.shape_cast %38 : vector<16xf32> to vector<16x1xf32>
    %40 = vector.broadcast %39 : vector<16x1xf32> to vector<16x16xf32>
    %41 = arith.subf %37, %40 : vector<16x16xf32>
    %42 = math.exp %41 : vector<16x16xf32>
    %cst_17 = arith.constant dense<0.000000e+00> : vector<16xf32>
    %43 = vector.multi_reduction <add>, %42, %cst_17 [1] : vector<16x16xf32> to vector<16xf32>
    %44 = vector.shape_cast %43 : vector<16xf32> to vector<16x1xf32>
    %45 = tpu.reciprocal %44 {approx = true} : vector<16x1xf32> -> vector<16x1xf32>
    %46 = vector.broadcast %45 : vector<16x1xf32> to vector<16x16xf32>
    %47 = arith.mulf %42, %46 : vector<16x16xf32>
    %48 = arith.truncf %47 : vector<16x16xf32> to vector<16x16xbf16>
    %cst_18 = arith.constant dense<0.000000e+00> : vector<16x8xf32>
    %49 = tpu.matmul %48, %35, %cst_18 {dimension_numbers = #tpu.dot_dimension_numbers<[1], [0], [0], [1], [0, 0, 1, 1], [], []>} : vector<16x16xbf16>, vector<16x8xbf16>, vector<16x8xf32> -> vector<16x8xf32>
    %50 = vector.extract_strided_slice %13 {offsets = [0, 16], sizes = [16, 8], strides = [1, 1]} : vector<16x32xbf16> to vector<16x8xbf16>
    %51 = vector.extract_strided_slice %14 {offsets = [0, 16], sizes = [16, 8], strides = [1, 1]} : vector<16x32xbf16> to vector<16x8xbf16>
    %52 = vector.extract_strided_slice %15 {offsets = [0, 16], sizes = [16, 8], strides = [1, 1]} : vector<16x32xbf16> to vector<16x8xbf16>
    %cst_19 = arith.constant dense<0.000000e+00> : vector<16x16xf32>
    %53 = tpu.matmul %50, %51, %cst_19 {dimension_numbers = #tpu.dot_dimension_numbers<[1], [1], [0], [0], [0, 0, 1, 0], [], []>} : vector<16x8xbf16>, vector<16x8xbf16>, vector<16x16xf32> -> vector<16x16xf32>
    %54 = arith.addf %53, %11 : vector<16x16xf32>
    %cst_20 = arith.constant dense<0xFF800000> : vector<16xf32>
    %55 = vector.multi_reduction <maximumf>, %54, %cst_20 [1] : vector<16x16xf32> to vector<16xf32>
    %56 = vector.shape_cast %55 : vector<16xf32> to vector<16x1xf32>
    %57 = vector.broadcast %56 : vector<16x1xf32> to vector<16x16xf32>
    %58 = arith.subf %54, %57 : vector<16x16xf32>
    %59 = math.exp %58 : vector<16x16xf32>
    %cst_21 = arith.constant dense<0.000000e+00> : vector<16xf32>
    %60 = vector.multi_reduction <add>, %59, %cst_21 [1] : vector<16x16xf32> to vector<16xf32>
    %61 = vector.shape_cast %60 : vector<16xf32> to vector<16x1xf32>
    %62 = tpu.reciprocal %61 {approx = true} : vector<16x1xf32> -> vector<16x1xf32>
    %63 = vector.broadcast %62 : vector<16x1xf32> to vector<16x16xf32>
    %64 = arith.mulf %59, %63 : vector<16x16xf32>
    %65 = arith.truncf %64 : vector<16x16xf32> to vector<16x16xbf16>
    %cst_22 = arith.constant dense<0.000000e+00> : vector<16x8xf32>
    %66 = tpu.matmul %65, %52, %cst_22 {dimension_numbers = #tpu.dot_dimension_numbers<[1], [0], [0], [1], [0, 0, 1, 1], [], []>} : vector<16x16xbf16>, vector<16x8xbf16>, vector<16x8xf32> -> vector<16x8xf32>
    %67 = vector.extract_strided_slice %13 {offsets = [0, 24], sizes = [16, 8], strides = [1, 1]} : vector<16x32xbf16> to vector<16x8xbf16>
    %68 = vector.extract_strided_slice %14 {offsets = [0, 24], sizes = [16, 8], strides = [1, 1]} : vector<16x32xbf16> to vector<16x8xbf16>
    %69 = vector.extract_strided_slice %15 {offsets = [0, 24], sizes = [16, 8], strides = [1, 1]} : vector<16x32xbf16> to vector<16x8xbf16>
    %cst_23 = arith.constant dense<0.000000e+00> : vector<16x16xf32>
    %70 = tpu.matmul %67, %68, %cst_23 {dimension_numbers = #tpu.dot_dimension_numbers<[1], [1], [0], [0], [0, 0, 1, 0], [], []>} : vector<16x8xbf16>, vector<16x8xbf16>, vector<16x16xf32> -> vector<16x16xf32>
    %71 = arith.addf %70, %11 : vector<16x16xf32>
    %cst_24 = arith.constant dense<0xFF800000> : vector<16xf32>
    %72 = vector.multi_reduction <maximumf>, %71, %cst_24 [1] : vector<16x16xf32> to vector<16xf32>
    %73 = vector.shape_cast %72 : vector<16xf32> to vector<16x1xf32>
    %74 = vector.broadcast %73 : vector<16x1xf32> to vector<16x16xf32>
    %75 = arith.subf %71, %74 : vector<16x16xf32>
    %76 = math.exp %75 : vector<16x16xf32>
    %cst_25 = arith.constant dense<0.000000e+00> : vector<16xf32>
    %77 = vector.multi_reduction <add>, %76, %cst_25 [1] : vector<16x16xf32> to vector<16xf32>
    %78 = vector.shape_cast %77 : vector<16xf32> to vector<16x1xf32>
    %79 = tpu.reciprocal %78 {approx = true} : vector<16x1xf32> -> vector<16x1xf32>
    %80 = vector.broadcast %79 : vector<16x1xf32> to vector<16x16xf32>
    %81 = arith.mulf %76, %80 : vector<16x16xf32>
    %82 = arith.truncf %81 : vector<16x16xf32> to vector<16x16xbf16>
    %cst_26 = arith.constant dense<0.000000e+00> : vector<16x8xf32>
    %83 = tpu.matmul %82, %69, %cst_26 {dimension_numbers = #tpu.dot_dimension_numbers<[1], [0], [0], [1], [0, 0, 1, 1], [], []>} : vector<16x16xbf16>, vector<16x8xbf16>, vector<16x8xf32> -> vector<16x8xf32>
    %84 = tpu.concatenate %32, %49, %66, %83 in 1 : vector<16x8xf32>, vector<16x8xf32>, vector<16x8xf32>, vector<16x8xf32> -> vector<16x32xf32>
    %85 = arith.truncf %84 : vector<16x32xf32> to vector<16x32xbf16>
    %c0_27 = arith.constant 0 : index
    %c0_28 = arith.constant 0 : index
    %86 = vector.load %arg8[%c0_27, %c0_28] : memref<32x32xbf16, #tpu.memory_space<vmem>>, vector<32x32xbf16>
    %cst_29 = arith.constant dense<0.000000e+00> : vector<16x32xf32>
    %87 = tpu.matmul %85, %86, %cst_29 {dimension_numbers = #tpu.dot_dimension_numbers<[1], [0], [0], [1], [0, 0, 1, 1], [], []>} : vector<16x32xbf16>, vector<32x32xbf16>, vector<16x32xf32> -> vector<16x32xf32>
    %88 = vector.broadcast %12 : vector<1x32xf32> to vector<16x32xf32>
    %89 = arith.addf %87, %88 : vector<16x32xf32>
    %90 = arith.addf %89, %0 : vector<16x32xf32>
    %c0_30 = arith.constant 0 : index
    %c0_31 = arith.constant 0 : index
    %91 = vector.load %arg20[%c0_30, %c0_31] : memref<1x32xf32, #tpu.memory_space<vmem>>, vector<1x32xf32>
    %c0_32 = arith.constant 0 : index
    %c0_33 = arith.constant 0 : index
    %92 = vector.load %arg21[%c0_32, %c0_33] : memref<1x32xf32, #tpu.memory_space<vmem>>, vector<1x32xf32>
    %cst_34 = arith.constant dense<0.000000e+00> : vector<16xf32>
    %93 = vector.multi_reduction <add>, %90, %cst_34 [1] : vector<16x32xf32> to vector<16xf32>
    %94 = vector.shape_cast %93 : vector<16xf32> to vector<16x1xf32>
    %cst_35 = arith.constant 3.200000e+01 : f32
    %95 = vector.broadcast %cst_35 : f32 to vector<16x1xf32>
    %96 = arith.divf %94, %95 : vector<16x1xf32>
    %97 = vector.broadcast %96 : vector<16x1xf32> to vector<16x32xf32>
    %98 = arith.subf %90, %97 : vector<16x32xf32>
    %99 = arith.mulf %98, %98 : vector<16x32xf32>
    %cst_36 = arith.constant dense<0.000000e+00> : vector<16xf32>
    %100 = vector.multi_reduction <add>, %99, %cst_36 [1] : vector<16x32xf32> to vector<16xf32>
    %101 = vector.shape_cast %100 : vector<16xf32> to vector<16x1xf32>
    %cst_37 = arith.constant 3.200000e+01 : f32
    %102 = vector.broadcast %cst_37 : f32 to vector<16x1xf32>
    %103 = arith.divf %101, %102 : vector<16x1xf32>
    %cst_38 = arith.constant 9.99999974E-6 : f32
    %104 = vector.broadcast %cst_38 : f32 to vector<16x1xf32>
    %105 = arith.addf %103, %104 : vector<16x1xf32>
    %106 = math.rsqrt %105 : vector<16x1xf32>
    %107 = vector.broadcast %106 : vector<16x1xf32> to vector<16x32xf32>
    %108 = arith.mulf %98, %107 : vector<16x32xf32>
    %109 = vector.broadcast %91 : vector<1x32xf32> to vector<16x32xf32>
    %110 = arith.mulf %108, %109 : vector<16x32xf32>
    %111 = vector.broadcast %92 : vector<1x32xf32> to vector<16x32xf32>
    %112 = arith.addf %110, %111 : vector<16x32xf32>
    %113 = arith.truncf %112 : vector<16x32xf32> to vector<16x32xbf16>
    %c0_39 = arith.constant 0 : index
    %c0_40 = arith.constant 0 : index
    %114 = vector.load %arg10[%c0_39, %c0_40] : memref<32x32xbf16, #tpu.memory_space<vmem>>, vector<32x32xbf16>
    %cst_41 = arith.constant dense<0.000000e+00> : vector<16x32xf32>
    %115 = tpu.matmul %113, %114, %cst_41 {dimension_numbers = #tpu.dot_dimension_numbers<[1], [0], [0], [1], [0, 0, 1, 1], [], []>} : vector<16x32xbf16>, vector<32x32xbf16>, vector<16x32xf32> -> vector<16x32xf32>
    %c0_42 = arith.constant 0 : index
    %c0_43 = arith.constant 0 : index
    %116 = vector.load %arg11[%c0_42, %c0_43] : memref<1x32xf32, #tpu.memory_space<vmem>>, vector<1x32xf32>
    %117 = vector.broadcast %116 : vector<1x32xf32> to vector<16x32xf32>
    %118 = arith.addf %115, %117 : vector<16x32xf32>
    %119 = arith.truncf %1 : vector<16x32xf32> to vector<16x32xbf16>
    %c0_44 = arith.constant 0 : index
    %c0_45 = arith.constant 0 : index
    %120 = vector.load %arg12[%c0_44, %c0_45] : memref<32x64xbf16, #tpu.memory_space<vmem>>, vector<32x64xbf16>
    %cst_46 = arith.constant dense<0.000000e+00> : vector<16x64xf32>
    %121 = tpu.matmul %119, %120, %cst_46 {dimension_numbers = #tpu.dot_dimension_numbers<[1], [0], [0], [1], [0, 0, 1, 1], [], []>} : vector<16x32xbf16>, vector<32x64xbf16>, vector<16x64xf32> -> vector<16x64xf32>
    %c0_47 = arith.constant 0 : index
    %c0_48 = arith.constant 0 : index
    %122 = vector.load %arg13[%c0_47, %c0_48] : memref<1x64xf32, #tpu.memory_space<vmem>>, vector<1x64xf32>
    %123 = vector.broadcast %122 : vector<1x64xf32> to vector<16x64xf32>
    %124 = arith.addf %121, %123 : vector<16x64xf32>
    %125 = vector.extract_strided_slice %124 {offsets = [0, 0], sizes = [16, 32], strides = [1, 1]} : vector<16x64xf32> to vector<16x32xf32>
    %126 = vector.extract_strided_slice %124 {offsets = [0, 32], sizes = [16, 32], strides = [1, 1]} : vector<16x64xf32> to vector<16x32xf32>
    %c0_49 = arith.constant 0 : index
    %c0_50 = arith.constant 0 : index
    %127 = vector.load %arg4[%c0_49, %c0_50] : memref<16x16xf32, #tpu.memory_space<vmem>>, vector<16x16xf32>
    %c0_51 = arith.constant 0 : index
    %c0_52 = arith.constant 0 : index
    %128 = vector.load %arg15[%c0_51, %c0_52] : memref<1x32xf32, #tpu.memory_space<vmem>>, vector<1x32xf32>
    %129 = arith.truncf %118 : vector<16x32xf32> to vector<16x32xbf16>
    %130 = arith.truncf %125 : vector<16x32xf32> to vector<16x32xbf16>
    %131 = arith.truncf %126 : vector<16x32xf32> to vector<16x32xbf16>
    %132 = vector.extract_strided_slice %129 {offsets = [0, 0], sizes = [16, 8], strides = [1, 1]} : vector<16x32xbf16> to vector<16x8xbf16>
    %133 = vector.extract_strided_slice %130 {offsets = [0, 0], sizes = [16, 8], strides = [1, 1]} : vector<16x32xbf16> to vector<16x8xbf16>
    %134 = vector.extract_strided_slice %131 {offsets = [0, 0], sizes = [16, 8], strides = [1, 1]} : vector<16x32xbf16> to vector<16x8xbf16>
    %cst_53 = arith.constant dense<0.000000e+00> : vector<16x16xf32>
    %135 = tpu.matmul %132, %133, %cst_53 {dimension_numbers = #tpu.dot_dimension_numbers<[1], [1], [0], [0], [0, 0, 1, 0], [], []>} : vector<16x8xbf16>, vector<16x8xbf16>, vector<16x16xf32> -> vector<16x16xf32>
    %136 = arith.addf %135, %127 : vector<16x16xf32>
    %cst_54 = arith.constant dense<0xFF800000> : vector<16xf32>
    %137 = vector.multi_reduction <maximumf>, %136, %cst_54 [1] : vector<16x16xf32> to vector<16xf32>
    %138 = vector.shape_cast %137 : vector<16xf32> to vector<16x1xf32>
    %139 = vector.broadcast %138 : vector<16x1xf32> to vector<16x16xf32>
    %140 = arith.subf %136, %139 : vector<16x16xf32>
    %141 = math.exp %140 : vector<16x16xf32>
    %cst_55 = arith.constant dense<0.000000e+00> : vector<16xf32>
    %142 = vector.multi_reduction <add>, %141, %cst_55 [1] : vector<16x16xf32> to vector<16xf32>
    %143 = vector.shape_cast %142 : vector<16xf32> to vector<16x1xf32>
    %144 = tpu.reciprocal %143 {approx = true} : vector<16x1xf32> -> vector<16x1xf32>
    %145 = vector.broadcast %144 : vector<16x1xf32> to vector<16x16xf32>
    %146 = arith.mulf %141, %145 : vector<16x16xf32>
    %147 = arith.truncf %146 : vector<16x16xf32> to vector<16x16xbf16>
    %cst_56 = arith.constant dense<0.000000e+00> : vector<16x8xf32>
    %148 = tpu.matmul %147, %134, %cst_56 {dimension_numbers = #tpu.dot_dimension_numbers<[1], [0], [0], [1], [0, 0, 1, 1], [], []>} : vector<16x16xbf16>, vector<16x8xbf16>, vector<16x8xf32> -> vector<16x8xf32>
    %149 = vector.extract_strided_slice %129 {offsets = [0, 8], sizes = [16, 8], strides = [1, 1]} : vector<16x32xbf16> to vector<16x8xbf16>
    %150 = vector.extract_strided_slice %130 {offsets = [0, 8], sizes = [16, 8], strides = [1, 1]} : vector<16x32xbf16> to vector<16x8xbf16>
    %151 = vector.extract_strided_slice %131 {offsets = [0, 8], sizes = [16, 8], strides = [1, 1]} : vector<16x32xbf16> to vector<16x8xbf16>
    %cst_57 = arith.constant dense<0.000000e+00> : vector<16x16xf32>
    %152 = tpu.matmul %149, %150, %cst_57 {dimension_numbers = #tpu.dot_dimension_numbers<[1], [1], [0], [0], [0, 0, 1, 0], [], []>} : vector<16x8xbf16>, vector<16x8xbf16>, vector<16x16xf32> -> vector<16x16xf32>
    %153 = arith.addf %152, %127 : vector<16x16xf32>
    %cst_58 = arith.constant dense<0xFF800000> : vector<16xf32>
    %154 = vector.multi_reduction <maximumf>, %153, %cst_58 [1] : vector<16x16xf32> to vector<16xf32>
    %155 = vector.shape_cast %154 : vector<16xf32> to vector<16x1xf32>
    %156 = vector.broadcast %155 : vector<16x1xf32> to vector<16x16xf32>
    %157 = arith.subf %153, %156 : vector<16x16xf32>
    %158 = math.exp %157 : vector<16x16xf32>
    %cst_59 = arith.constant dense<0.000000e+00> : vector<16xf32>
    %159 = vector.multi_reduction <add>, %158, %cst_59 [1] : vector<16x16xf32> to vector<16xf32>
    %160 = vector.shape_cast %159 : vector<16xf32> to vector<16x1xf32>
    %161 = tpu.reciprocal %160 {approx = true} : vector<16x1xf32> -> vector<16x1xf32>
    %162 = vector.broadcast %161 : vector<16x1xf32> to vector<16x16xf32>
    %163 = arith.mulf %158, %162 : vector<16x16xf32>
    %164 = arith.truncf %163 : vector<16x16xf32> to vector<16x16xbf16>
    %cst_60 = arith.constant dense<0.000000e+00> : vector<16x8xf32>
    %165 = tpu.matmul %164, %151, %cst_60 {dimension_numbers = #tpu.dot_dimension_numbers<[1], [0], [0], [1], [0, 0, 1, 1], [], []>} : vector<16x16xbf16>, vector<16x8xbf16>, vector<16x8xf32> -> vector<16x8xf32>
    %166 = vector.extract_strided_slice %129 {offsets = [0, 16], sizes = [16, 8], strides = [1, 1]} : vector<16x32xbf16> to vector<16x8xbf16>
    %167 = vector.extract_strided_slice %130 {offsets = [0, 16], sizes = [16, 8], strides = [1, 1]} : vector<16x32xbf16> to vector<16x8xbf16>
    %168 = vector.extract_strided_slice %131 {offsets = [0, 16], sizes = [16, 8], strides = [1, 1]} : vector<16x32xbf16> to vector<16x8xbf16>
    %cst_61 = arith.constant dense<0.000000e+00> : vector<16x16xf32>
    %169 = tpu.matmul %166, %167, %cst_61 {dimension_numbers = #tpu.dot_dimension_numbers<[1], [1], [0], [0], [0, 0, 1, 0], [], []>} : vector<16x8xbf16>, vector<16x8xbf16>, vector<16x16xf32> -> vector<16x16xf32>
    %170 = arith.addf %169, %127 : vector<16x16xf32>
    %cst_62 = arith.constant dense<0xFF800000> : vector<16xf32>
    %171 = vector.multi_reduction <maximumf>, %170, %cst_62 [1] : vector<16x16xf32> to vector<16xf32>
    %172 = vector.shape_cast %171 : vector<16xf32> to vector<16x1xf32>
    %173 = vector.broadcast %172 : vector<16x1xf32> to vector<16x16xf32>
    %174 = arith.subf %170, %173 : vector<16x16xf32>
    %175 = math.exp %174 : vector<16x16xf32>
    %cst_63 = arith.constant dense<0.000000e+00> : vector<16xf32>
    %176 = vector.multi_reduction <add>, %175, %cst_63 [1] : vector<16x16xf32> to vector<16xf32>
    %177 = vector.shape_cast %176 : vector<16xf32> to vector<16x1xf32>
    %178 = tpu.reciprocal %177 {approx = true} : vector<16x1xf32> -> vector<16x1xf32>
    %179 = vector.broadcast %178 : vector<16x1xf32> to vector<16x16xf32>
    %180 = arith.mulf %175, %179 : vector<16x16xf32>
    %181 = arith.truncf %180 : vector<16x16xf32> to vector<16x16xbf16>
    %cst_64 = arith.constant dense<0.000000e+00> : vector<16x8xf32>
    %182 = tpu.matmul %181, %168, %cst_64 {dimension_numbers = #tpu.dot_dimension_numbers<[1], [0], [0], [1], [0, 0, 1, 1], [], []>} : vector<16x16xbf16>, vector<16x8xbf16>, vector<16x8xf32> -> vector<16x8xf32>
    %183 = vector.extract_strided_slice %129 {offsets = [0, 24], sizes = [16, 8], strides = [1, 1]} : vector<16x32xbf16> to vector<16x8xbf16>
    %184 = vector.extract_strided_slice %130 {offsets = [0, 24], sizes = [16, 8], strides = [1, 1]} : vector<16x32xbf16> to vector<16x8xbf16>
    %185 = vector.extract_strided_slice %131 {offsets = [0, 24], sizes = [16, 8], strides = [1, 1]} : vector<16x32xbf16> to vector<16x8xbf16>
    %cst_65 = arith.constant dense<0.000000e+00> : vector<16x16xf32>
    %186 = tpu.matmul %183, %184, %cst_65 {dimension_numbers = #tpu.dot_dimension_numbers<[1], [1], [0], [0], [0, 0, 1, 0], [], []>} : vector<16x8xbf16>, vector<16x8xbf16>, vector<16x16xf32> -> vector<16x16xf32>
    %187 = arith.addf %186, %127 : vector<16x16xf32>
    %cst_66 = arith.constant dense<0xFF800000> : vector<16xf32>
    %188 = vector.multi_reduction <maximumf>, %187, %cst_66 [1] : vector<16x16xf32> to vector<16xf32>
    %189 = vector.shape_cast %188 : vector<16xf32> to vector<16x1xf32>
    %190 = vector.broadcast %189 : vector<16x1xf32> to vector<16x16xf32>
    %191 = arith.subf %187, %190 : vector<16x16xf32>
    %192 = math.exp %191 : vector<16x16xf32>
    %cst_67 = arith.constant dense<0.000000e+00> : vector<16xf32>
    %193 = vector.multi_reduction <add>, %192, %cst_67 [1] : vector<16x16xf32> to vector<16xf32>
    %194 = vector.shape_cast %193 : vector<16xf32> to vector<16x1xf32>
    %195 = tpu.reciprocal %194 {approx = true} : vector<16x1xf32> -> vector<16x1xf32>
    %196 = vector.broadcast %195 : vector<16x1xf32> to vector<16x16xf32>
    %197 = arith.mulf %192, %196 : vector<16x16xf32>
    %198 = arith.truncf %197 : vector<16x16xf32> to vector<16x16xbf16>
    %cst_68 = arith.constant dense<0.000000e+00> : vector<16x8xf32>
    %199 = tpu.matmul %198, %185, %cst_68 {dimension_numbers = #tpu.dot_dimension_numbers<[1], [0], [0], [1], [0, 0, 1, 1], [], []>} : vector<16x16xbf16>, vector<16x8xbf16>, vector<16x8xf32> -> vector<16x8xf32>
    %200 = tpu.concatenate %148, %165, %182, %199 in 1 : vector<16x8xf32>, vector<16x8xf32>, vector<16x8xf32>, vector<16x8xf32> -> vector<16x32xf32>
    %201 = arith.truncf %200 : vector<16x32xf32> to vector<16x32xbf16>
    %c0_69 = arith.constant 0 : index
    %c0_70 = arith.constant 0 : index
    %202 = vector.load %arg14[%c0_69, %c0_70] : memref<32x32xbf16, #tpu.memory_space<vmem>>, vector<32x32xbf16>
    %cst_71 = arith.constant dense<0.000000e+00> : vector<16x32xf32>
    %203 = tpu.matmul %201, %202, %cst_71 {dimension_numbers = #tpu.dot_dimension_numbers<[1], [0], [0], [1], [0, 0, 1, 1], [], []>} : vector<16x32xbf16>, vector<32x32xbf16>, vector<16x32xf32> -> vector<16x32xf32>
    %204 = vector.broadcast %128 : vector<1x32xf32> to vector<16x32xf32>
    %205 = arith.addf %203, %204 : vector<16x32xf32>
    %206 = arith.addf %205, %112 : vector<16x32xf32>
    %c0_72 = arith.constant 0 : index
    %c0_73 = arith.constant 0 : index
    %207 = vector.load %arg22[%c0_72, %c0_73] : memref<1x32xf32, #tpu.memory_space<vmem>>, vector<1x32xf32>
    %c0_74 = arith.constant 0 : index
    %c0_75 = arith.constant 0 : index
    %208 = vector.load %arg23[%c0_74, %c0_75] : memref<1x32xf32, #tpu.memory_space<vmem>>, vector<1x32xf32>
    %cst_76 = arith.constant dense<0.000000e+00> : vector<16xf32>
    %209 = vector.multi_reduction <add>, %206, %cst_76 [1] : vector<16x32xf32> to vector<16xf32>
    %210 = vector.shape_cast %209 : vector<16xf32> to vector<16x1xf32>
    %cst_77 = arith.constant 3.200000e+01 : f32
    %211 = vector.broadcast %cst_77 : f32 to vector<16x1xf32>
    %212 = arith.divf %210, %211 : vector<16x1xf32>
    %213 = vector.broadcast %212 : vector<16x1xf32> to vector<16x32xf32>
    %214 = arith.subf %206, %213 : vector<16x32xf32>
    %215 = arith.mulf %214, %214 : vector<16x32xf32>
    %cst_78 = arith.constant dense<0.000000e+00> : vector<16xf32>
    %216 = vector.multi_reduction <add>, %215, %cst_78 [1] : vector<16x32xf32> to vector<16xf32>
    %217 = vector.shape_cast %216 : vector<16xf32> to vector<16x1xf32>
    %cst_79 = arith.constant 3.200000e+01 : f32
    %218 = vector.broadcast %cst_79 : f32 to vector<16x1xf32>
    %219 = arith.divf %217, %218 : vector<16x1xf32>
    %cst_80 = arith.constant 9.99999974E-6 : f32
    %220 = vector.broadcast %cst_80 : f32 to vector<16x1xf32>
    %221 = arith.addf %219, %220 : vector<16x1xf32>
    %222 = math.rsqrt %221 : vector<16x1xf32>
    %223 = vector.broadcast %222 : vector<16x1xf32> to vector<16x32xf32>
    %224 = arith.mulf %214, %223 : vector<16x32xf32>
    %225 = vector.broadcast %207 : vector<1x32xf32> to vector<16x32xf32>
    %226 = arith.mulf %224, %225 : vector<16x32xf32>
    %227 = vector.broadcast %208 : vector<1x32xf32> to vector<16x32xf32>
    %228 = arith.addf %226, %227 : vector<16x32xf32>
    %229 = arith.truncf %228 : vector<16x32xf32> to vector<16x32xbf16>
    %c0_81 = arith.constant 0 : index
    %c0_82 = arith.constant 0 : index
    %230 = vector.load %arg16[%c0_81, %c0_82] : memref<32x64xbf16, #tpu.memory_space<vmem>>, vector<32x64xbf16>
    %cst_83 = arith.constant dense<0.000000e+00> : vector<16x64xf32>
    %231 = tpu.matmul %229, %230, %cst_83 {dimension_numbers = #tpu.dot_dimension_numbers<[1], [0], [0], [1], [0, 0, 1, 1], [], []>} : vector<16x32xbf16>, vector<32x64xbf16>, vector<16x64xf32> -> vector<16x64xf32>
    %c0_84 = arith.constant 0 : index
    %c0_85 = arith.constant 0 : index
    %232 = vector.load %arg17[%c0_84, %c0_85] : memref<1x64xf32, #tpu.memory_space<vmem>>, vector<1x64xf32>
    %233 = vector.broadcast %232 : vector<1x64xf32> to vector<16x64xf32>
    %234 = arith.addf %231, %233 : vector<16x64xf32>
    %cst_86 = arith.constant 0.000000e+00 : f32
    %235 = vector.broadcast %cst_86 : f32 to vector<16x64xf32>
    %236 = arith.maximumf %234, %235 : vector<16x64xf32>
    %c0_87 = arith.constant 0 : index
    %c0_88 = arith.constant 0 : index
    %237 = vector.load %arg24[%c0_87, %c0_88] : memref<1x64xf32, #tpu.memory_space<vmem>>, vector<1x64xf32>
    %c0_89 = arith.constant 0 : index
    %c0_90 = arith.constant 0 : index
    %238 = vector.load %arg25[%c0_89, %c0_90] : memref<1x64xf32, #tpu.memory_space<vmem>>, vector<1x64xf32>
    %cst_91 = arith.constant dense<0.000000e+00> : vector<16xf32>
    %239 = vector.multi_reduction <add>, %236, %cst_91 [1] : vector<16x64xf32> to vector<16xf32>
    %240 = vector.shape_cast %239 : vector<16xf32> to vector<16x1xf32>
    %cst_92 = arith.constant 6.400000e+01 : f32
    %241 = vector.broadcast %cst_92 : f32 to vector<16x1xf32>
    %242 = arith.divf %240, %241 : vector<16x1xf32>
    %243 = vector.broadcast %242 : vector<16x1xf32> to vector<16x64xf32>
    %244 = arith.subf %236, %243 : vector<16x64xf32>
    %245 = arith.mulf %244, %244 : vector<16x64xf32>
    %cst_93 = arith.constant dense<0.000000e+00> : vector<16xf32>
    %246 = vector.multi_reduction <add>, %245, %cst_93 [1] : vector<16x64xf32> to vector<16xf32>
    %247 = vector.shape_cast %246 : vector<16xf32> to vector<16x1xf32>
    %cst_94 = arith.constant 6.400000e+01 : f32
    %248 = vector.broadcast %cst_94 : f32 to vector<16x1xf32>
    %249 = arith.divf %247, %248 : vector<16x1xf32>
    %cst_95 = arith.constant 9.99999974E-6 : f32
    %250 = vector.broadcast %cst_95 : f32 to vector<16x1xf32>
    %251 = arith.addf %249, %250 : vector<16x1xf32>
    %252 = math.rsqrt %251 : vector<16x1xf32>
    %253 = vector.broadcast %252 : vector<16x1xf32> to vector<16x64xf32>
    %254 = arith.mulf %244, %253 : vector<16x64xf32>
    %255 = vector.broadcast %237 : vector<1x64xf32> to vector<16x64xf32>
    %256 = arith.mulf %254, %255 : vector<16x64xf32>
    %257 = vector.broadcast %238 : vector<1x64xf32> to vector<16x64xf32>
    %258 = arith.addf %256, %257 : vector<16x64xf32>
    %c0_96 = arith.constant 0 : index
    %c0_97 = arith.constant 0 : index
    %259 = vector.load %arg5[%c0_96, %c0_97] : memref<16x64xf32, #tpu.memory_space<vmem>>, vector<16x64xf32>
    %260 = arith.mulf %258, %259 : vector<16x64xf32>
    %261 = arith.truncf %260 : vector<16x64xf32> to vector<16x64xbf16>
    %c0_98 = arith.constant 0 : index
    %c0_99 = arith.constant 0 : index
    %262 = vector.load %arg18[%c0_98, %c0_99] : memref<64x32xbf16, #tpu.memory_space<vmem>>, vector<64x32xbf16>
    %cst_100 = arith.constant dense<0.000000e+00> : vector<16x32xf32>
    %263 = tpu.matmul %261, %262, %cst_100 {dimension_numbers = #tpu.dot_dimension_numbers<[1], [0], [0], [1], [0, 0, 1, 1], [], []>} : vector<16x64xbf16>, vector<64x32xbf16>, vector<16x32xf32> -> vector<16x32xf32>
    %c0_101 = arith.constant 0 : index
    %c0_102 = arith.constant 0 : index
    %264 = vector.load %arg19[%c0_101, %c0_102] : memref<1x32xf32, #tpu.memory_space<vmem>>, vector<1x32xf32>
    %265 = vector.broadcast %264 : vector<1x32xf32> to vector<16x32xf32>
    %266 = arith.addf %263, %265 : vector<16x32xf32>
    %267 = arith.addf %266, %228 : vector<16x32xf32>
    %c0_103 = arith.constant 0 : index
    %c0_104 = arith.constant 0 : index
    %268 = vector.load %arg26[%c0_103, %c0_104] : memref<1x32xf32, #tpu.memory_space<vmem>>, vector<1x32xf32>
    %c0_105 = arith.constant 0 : index
    %c0_106 = arith.constant 0 : index
    %269 = vector.load %arg27[%c0_105, %c0_106] : memref<1x32xf32, #tpu.memory_space<vmem>>, vector<1x32xf32>
    %cst_107 = arith.constant dense<0.000000e+00> : vector<16xf32>
    %270 = vector.multi_reduction <add>, %267, %cst_107 [1] : vector<16x32xf32> to vector<16xf32>
    %271 = vector.shape_cast %270 : vector<16xf32> to vector<16x1xf32>
    %cst_108 = arith.constant 3.200000e+01 : f32
    %272 = vector.broadcast %cst_108 : f32 to vector<16x1xf32>
    %273 = arith.divf %271, %272 : vector<16x1xf32>
    %274 = vector.broadcast %273 : vector<16x1xf32> to vector<16x32xf32>
    %275 = arith.subf %267, %274 : vector<16x32xf32>
    %276 = arith.mulf %275, %275 : vector<16x32xf32>
    %cst_109 = arith.constant dense<0.000000e+00> : vector<16xf32>
    %277 = vector.multi_reduction <add>, %276, %cst_109 [1] : vector<16x32xf32> to vector<16xf32>
    %278 = vector.shape_cast %277 : vector<16xf32> to vector<16x1xf32>
    %cst_110 = arith.constant 3.200000e+01 : f32
    %279 = vector.broadcast %cst_110 : f32 to vector<16x1xf32>
    %280 = arith.divf %278, %279 : vector<16x1xf32>
    %cst_111 = arith.constant 9.99999974E-6 : f32
    %281 = vector.broadcast %cst_111 : f32 to vector<16x1xf32>
    %282 = arith.addf %280, %281 : vector<16x1xf32>
    %283 = math.rsqrt %282 : vector<16x1xf32>
    %284 = vector.broadcast %283 : vector<16x1xf32> to vector<16x32xf32>
    %285 = arith.mulf %275, %284 : vector<16x32xf32>
    %286 = vector.broadcast %268 : vector<1x32xf32> to vector<16x32xf32>
    %287 = arith.mulf %285, %286 : vector<16x32xf32>
    %288 = vector.broadcast %269 : vector<1x32xf32> to vector<16x32xf32>
    %289 = arith.addf %287, %288 : vector<16x32xf32>
    %290 = vector.extract_strided_slice %289 {offsets = [0, 0], sizes = [4, 32], strides = [1, 1]} : vector<16x32xf32> to vector<4x32xf32>
    %291 = vector.extract_strided_slice %289 {offsets = [4, 0], sizes = [4, 32], strides = [1, 1]} : vector<16x32xf32> to vector<4x32xf32>
    %292 = vector.extract_strided_slice %289 {offsets = [8, 0], sizes = [4, 32], strides = [1, 1]} : vector<16x32xf32> to vector<4x32xf32>
    %293 = vector.extract_strided_slice %289 {offsets = [12, 0], sizes = [4, 32], strides = [1, 1]} : vector<16x32xf32> to vector<4x32xf32>
    %294 = tpu.concatenate %290, %291, %292, %293 in 1 : vector<4x32xf32>, vector<4x32xf32>, vector<4x32xf32>, vector<4x32xf32> -> vector<4x128xf32>
    %c0_112 = arith.constant 0 : index
    %c0_113 = arith.constant 0 : index
    %295 = vector.load %arg28[%c0_112, %c0_113] : memref<4x128xf32, #tpu.memory_space<vmem>>, vector<4x128xf32>
    tpu.vector_store %arg28[%c0_112, %c0_113], %294 {strides = array<i32>} : memref<4x128xf32, #tpu.memory_space<vmem>>, vector<4x128xf32>,
    return
  }
  func.func @transform_0(%arg0: i32) -> (i32, i32) {
    %c0_i32 = arith.constant 0 : i32
    %c0_i32_0 = arith.constant 0 : i32
    %c0_i32_1 = arith.constant 0 : i32
    return %c0_i32, %c0_i32_0 : i32, i32
  }
  func.func @transform_1(%arg0: i32) -> (i32, i32) {
    %c0_i32 = arith.constant 0 : i32
    %c0_i32_0 = arith.constant 0 : i32
    %c0_i32_1 = arith.constant 0 : i32
    return %c0_i32, %c0_i32_0 : i32, i32
  }
  func.func @transform_2(%arg0: i32) -> (i32, i32) {
    %c0_i32 = arith.constant 0 : i32
    %c0_i32_0 = arith.constant 0 : i32
    %c0_i32_1 = arith.constant 0 : i32
    return %c0_i32, %c0_i32_0 : i32, i32
  }
  func.func @transform_3(%arg0: i32) -> (i32, i32) {
    %c0_i32 = arith.constant 0 : i32
    %c0_i32_0 = arith.constant 0 : i32
    %c0_i32_1 = arith.constant 0 : i32
    return %c0_i32, %c0_i32_0 : i32, i32
  }
  func.func @transform_4(%arg0: i32) -> (i32, i32) {
    %c0_i32 = arith.constant 0 : i32
    %c0_i32_0 = arith.constant 0 : i32
    %c0_i32_1 = arith.constant 0 : i32
    return %c0_i32, %c0_i32_0 : i32, i32
  }
  func.func @transform_5(%arg0: i32) -> (i32, i32) {
    %c0_i32 = arith.constant 0 : i32
    %c0_i32_0 = arith.constant 0 : i32
    %c0_i32_1 = arith.constant 0 : i32
    return %c0_i32, %c0_i32_0 : i32, i32
  }
  func.func @transform_6(%arg0: i32) -> (i32, i32) {
    %c0_i32 = arith.constant 0 : i32
    %c0_i32_0 = arith.constant 0 : i32
    %c0_i32_1 = arith.constant 0 : i32
    return %c0_i32, %c0_i32_0 : i32, i32
  }
  func.func @transform_7(%arg0: i32) -> (i32, i32) {
    %c0_i32 = arith.constant 0 : i32
    %c0_i32_0 = arith.constant 0 : i32
    %c0_i32_1 = arith.constant 0 : i32
    return %c0_i32, %c0_i32_0 : i32, i32
  }
  func.func @transform_8(%arg0: i32) -> (i32, i32) {
    %c0_i32 = arith.constant 0 : i32
    %c0_i32_0 = arith.constant 0 : i32
    %c0_i32_1 = arith.constant 0 : i32
    return %c0_i32, %c0_i32_0 : i32, i32
  }
  func.func @transform_9(%arg0: i32) -> (i32, i32) {
    %c0_i32 = arith.constant 0 : i32
    %c0_i32_0 = arith.constant 0 : i32
    %c0_i32_1 = arith.constant 0 : i32
    return %c0_i32, %c0_i32_0 : i32, i32
  }
  func.func @transform_10(%arg0: i32) -> (i32, i32) {
    %c0_i32 = arith.constant 0 : i32
    %c0_i32_0 = arith.constant 0 : i32
    %c0_i32_1 = arith.constant 0 : i32
    return %c0_i32, %c0_i32_0 : i32, i32
  }
  func.func @transform_11(%arg0: i32) -> (i32, i32) {
    %c0_i32 = arith.constant 0 : i32
    %c0_i32_0 = arith.constant 0 : i32
    %c0_i32_1 = arith.constant 0 : i32
    return %c0_i32, %c0_i32_0 : i32, i32
  }
  func.func @transform_12(%arg0: i32) -> (i32, i32) {
    %c0_i32 = arith.constant 0 : i32
    %c0_i32_0 = arith.constant 0 : i32
    %c0_i32_1 = arith.constant 0 : i32
    return %c0_i32, %c0_i32_0 : i32, i32
  }
  func.func @transform_13(%arg0: i32) -> (i32, i32) {
    %c0_i32 = arith.constant 0 : i32
    %c0_i32_0 = arith.constant 0 : i32
    %c0_i32_1 = arith.constant 0 : i32
    return %c0_i32, %c0_i32_0 : i32, i32
  }
  func.func @transform_14(%arg0: i32) -> (i32, i32) {
    %c0_i32 = arith.constant 0 : i32
    %c0_i32_0 = arith.constant 0 : i32
    %c0_i32_1 = arith.constant 0 : i32
    return %c0_i32, %c0_i32_0 : i32, i32
  }
  func.func @transform_15(%arg0: i32) -> (i32, i32) {
    %c0_i32 = arith.constant 0 : i32
    %c0_i32_0 = arith.constant 0 : i32
    %c0_i32_1 = arith.constant 0 : i32
    return %c0_i32, %c0_i32_0 : i32, i32
  }
  func.func @transform_16(%arg0: i32) -> (i32, i32) {
    %c0_i32 = arith.constant 0 : i32
    %c0_i32_0 = arith.constant 0 : i32
    %c0_i32_1 = arith.constant 0 : i32
    return %c0_i32, %c0_i32_0 : i32, i32
  }
  func.func @transform_17(%arg0: i32) -> (i32, i32) {
    %c0_i32 = arith.constant 0 : i32
    %c0_i32_0 = arith.constant 0 : i32
    %c0_i32_1 = arith.constant 0 : i32
    return %c0_i32, %c0_i32_0 : i32, i32
  }
  func.func @transform_18(%arg0: i32) -> (i32, i32) {
    %c0_i32 = arith.constant 0 : i32
    %c0_i32_0 = arith.constant 0 : i32
    %c0_i32_1 = arith.constant 0 : i32
    return %c0_i32, %c0_i32_0 : i32, i32
  }
  func.func @transform_19(%arg0: i32) -> (i32, i32) {
    %c0_i32 = arith.constant 0 : i32
    %c0_i32_0 = arith.constant 0 : i32
    %c0_i32_1 = arith.constant 0 : i32
    return %c0_i32, %c0_i32_0 : i32, i32
  }
  func.func @transform_20(%arg0: i32) -> (i32, i32) {
    %c0_i32 = arith.constant 0 : i32
    %c0_i32_0 = arith.constant 0 : i32
    %c0_i32_1 = arith.constant 0 : i32
    return %c0_i32, %c0_i32_0 : i32, i32
  }
  func.func @transform_21(%arg0: i32) -> (i32, i32) {
    %c0_i32 = arith.constant 0 : i32
    %c0_i32_0 = arith.constant 0 : i32
    %c0_i32_1 = arith.constant 0 : i32
    return %c0_i32, %c0_i32_0 : i32, i32
  }
  func.func @transform_22(%arg0: i32) -> (i32, i32) {
    %c0_i32 = arith.constant 0 : i32
    %c0_i32_0 = arith.constant 0 : i32
    %c0_i32_1 = arith.constant 0 : i32
    return %c0_i32, %c0_i32_0 : i32, i32
  }
  func.func @transform_23(%arg0: i32) -> (i32, i32) {
    %c0_i32 = arith.constant 0 : i32
    %c0_i32_0 = arith.constant 0 : i32
    %c0_i32_1 = arith.constant 0 : i32
    return %c0_i32, %c0_i32_0 : i32, i32
  }
  func.func @transform_24(%arg0: i32) -> (i32, i32) {
    %c0_i32 = arith.constant 0 : i32
    %c0_i32_0 = arith.constant 0 : i32
    %c0_i32_1 = arith.constant 0 : i32
    return %c0_i32, %c0_i32_0 : i32, i32
  }
  func.func @transform_25(%arg0: i32) -> (i32, i32) {
    %c0_i32 = arith.constant 0 : i32
    %c0_i32_0 = arith.constant 0 : i32
    %c0_i32_1 = arith.constant 0 : i32
    return %c0_i32, %c0_i32_0 : i32, i32
  }
  func.func @transform_26(%arg0: i32) -> (i32, i32) {
    %c0_i32 = arith.constant 0 : i32
    %c0_i32_0 = arith.constant 0 : i32
    %c0_i32_1 = arith.constant 0 : i32
    return %c0_i32, %c0_i32_0 : i32, i32
  }
  func.func @transform_27(%arg0: i32) -> (i32, i32) {
    %c0_i32 = arith.constant 0 : i32
    %c0_i32_0 = arith.constant 0 : i32
    %c0_i32_1 = arith.constant 0 : i32
    return %c0_i32, %c0_i32_0 : i32, i32
  }
}

</mosaic_0001>

<llo_original>
// kernel: tpu_custom_call.1
$region0: #{tpu_custom_call.1}
  #allocation0 [shape = 'u32[]', space=smem, size = 0x4, offset = 0x4, fixed_abs, tag = 'smem constant byte address 0x4 - core index']
  #allocation1 [shape = 'u32[144,128]{1,0:T(1,128)}', space=vmem, size = 0x12000, scoped, tag = 'internal scratch']
  %s0 = inlined_call_operand.vmem [shape: f32[16,32], index: 0, kind: input, shape index: {}]
  %s1 = inlined_call_operand.vmem [shape: f32[16,32], index: 1, kind: input, shape index: {}]
  %s2 = inlined_call_operand.vmem [shape: f32[16,16], index: 2, kind: input, shape index: {}]
  %s3 = inlined_call_operand.hbm [shape: f32[16,16], index: 3, kind: input, shape index: {}]
  %s4 = inlined_call_operand.hbm [shape: f32[16,64], index: 4, kind: input, shape index: {}]
  %s5 = inlined_call_operand.vmem [shape: bf16[32,96], index: 5, kind: input, shape index: {}]
  %s6 = inlined_call_operand.hbm [shape: f32[1,96], index: 6, kind: input, shape index: {}]
  %s7 = inlined_call_operand.hbm [shape: bf16[32,32], index: 7, kind: input, shape index: {}]
  %s8 = inlined_call_operand.hbm [shape: f32[1,32], index: 8, kind: input, shape index: {}]
  %s9 = inlined_call_operand.vmem [shape: bf16[32,32], index: 9, kind: input, shape index: {}]
  %s10 = inlined_call_operand.hbm [shape: f32[1,32], index: 10, kind: input, shape index: {}]
  %s11 = inlined_call_operand.hbm [shape: bf16[32,64], index: 11, kind: input, shape index: {}]
  %s12 = inlined_call_operand.hbm [shape: f32[1,64], index: 12, kind: input, shape index: {}]
  %s13 = inlined_call_operand.vmem [shape: bf16[32,32], index: 13, kind: input, shape index: {}]
  %s14 = inlined_call_operand.hbm [shape: f32[1,32], index: 14, kind: input, shape index: {}]
  %s15 = inlined_call_operand.hbm [shape: bf16[32,64], index: 15, kind: input, shape index: {}]
  %s16 = inlined_call_operand.hbm [shape: f32[1,64], index: 16, kind: input, shape index: {}]
  %s17 = inlined_call_operand.vmem [shape: bf16[64,32], index: 17, kind: input, shape index: {}]
  %s18 = inlined_call_operand.vmem [shape: f32[1,32], index: 18, kind: input, shape index: {}]
  %s19 = inlined_call_operand.vmem [shape: f32[1,32], index: 19, kind: input, shape index: {}]
  %s20 = inlined_call_operand.vmem [shape: f32[1,32], index: 20, kind: input, shape index: {}]
  %s21 = inlined_call_operand.vmem [shape: f32[1,32], index: 21, kind: input, shape index: {}]
  %s22 = inlined_call_operand.vmem [shape: f32[1,32], index: 22, kind: input, shape index: {}]
  %s23 = inlined_call_operand.vmem [shape: f32[1,64], index: 23, kind: input, shape index: {}]
  %s24 = inlined_call_operand.vmem [shape: f32[1,64], index: 24, kind: input, shape index: {}]
  %s25 = inlined_call_operand.vmem [shape: f32[1,32], index: 25, kind: input, shape index: {}]
  %s26 = inlined_call_operand.vmem [shape: f32[1,32], index: 26, kind: input, shape index: {}]
  %s27 = inlined_call_operand.hbm [shape: f32[4,128], index: 27, kind: output, shape index: {}]
  %s28 = sld [smem:[#allocation0]]
  $region162: #{tpu_custom_call.1} parent=0
    _
  %s30 = ssub.s32 1, %s28
  %s31 = scalar_select 0, %s30, %s28
  $region1: #{tpu_custom_call.1} parent=0
    #allocation2 [shape = 'u8[8192]{0}', space=vmem, size = 0x2000, scoped, tag = 'input window, operand 3, single buffered']
    #allocation3 [shape = 's32[1]{0}', space=sflag, size = 0x4, scoped, tag = 'scoped memory for tpu_custom_call.1']
    #allocation4 [shape = 's32[1]{0}', space=sflag, size = 0x4, scoped, tag = 'scoped memory for tpu_custom_call.1']
    #allocation5 [shape = 'u8[8192]{0}', space=vmem, size = 0x2000, scoped, tag = 'input window, operand 4, single buffered']
    #allocation6 [shape = 's32[1]{0}', space=sflag, size = 0x4, scoped, tag = 'scoped memory for tpu_custom_call.1']
    #allocation7 [shape = 'u8[512]{0}', space=vmem, size = 0x400, scoped, tag = 'input window, operand 6, single buffered']
    #allocation8 [shape = 'u8[8192]{0}', space=vmem, size = 0x2000, scoped, tag = 'input window, operand 7, single buffered']
    #allocation9 [shape = 's32[1]{0}', space=sflag, size = 0x4, scoped, tag = 'scoped memory for tpu_custom_call.1']
    #allocation10 [shape = 'u8[512]{0}', space=vmem, size = 0x400, scoped, tag = 'input window, operand 8, single buffered']
    #allocation11 [shape = 'u8[512]{0}', space=vmem, size = 0x400, scoped, tag = 'input window, operand 10, single buffered']
    #allocation12 [shape = 's32[1]{0}', space=sflag, size = 0x4, scoped, tag = 'scoped memory for tpu_custom_call.1']
    #allocation13 [shape = 'u8[8192]{0}', space=vmem, size = 0x2000, scoped, tag = 'input window, operand 11, single buffered']
    #allocation14 [shape = 'u8[512]{0}', space=vmem, size = 0x400, scoped, tag = 'input window, operand 12, single buffered']
    #allocation15 [shape = 's32[1]{0}', space=sflag, size = 0x4, scoped, tag = 'scoped memory for tpu_custom_call.1']
    #allocation16 [shape = 'u8[512]{0}', space=vmem, size = 0x400, scoped, tag = 'input window, operand 14, single buffered']
    #allocation17 [shape = 'u8[8192]{0}', space=vmem, size = 0x2000, scoped, tag = 'input window, operand 15, single buffered']
    #allocation18 [shape = 's32[1]{0}', space=sflag, size = 0x4, scoped, tag = 'scoped memory for tpu_custom_call.1']
    #allocation19 [shape = 'u8[512]{0}', space=vmem, size = 0x400, scoped, tag = 'input window, operand 16, single buffered']
    #allocation20 [shape = 'u8[2048]{0}', space=vmem, size = 0x800, scoped, tag = 'output window, operand 0, single buffered']
    %32 = vsyncpa [#allocation3], 0
    %33 = vsyncpa [#allocation6], 0
    %34 = vsyncpa [#allocation9], 0
    %35 = vsyncpa [#allocation12], 0
    %36 = vsyncpa [#allocation15], 0
    %37 = vsyncpa [#allocation18], 0
    %38 = vsyncpa [#allocation4], 0
    // Predicated region
    $region2: #{tpu_custom_call.1} parent=1 // pred_check
      _
    $region3: #{tpu_custom_call.1} parent=1 // pred_check_branch
      %40 = sbr.rel (0) target = $region5
    $region4: #{tpu_custom_call.1} parent=1 // pred_region
      _
    $region5: #{tpu_custom_call.1} parent=1 // pred_fallthru
      _
    // Predicated region
    $region6: #{tpu_custom_call.1} parent=1 // pred_check
      _
    $region7: #{tpu_custom_call.1} parent=1 // pred_check_branch
      %42 = sbr.rel (0) target = $region9
    $region8: #{tpu_custom_call.1} parent=1 // pred_region
      _
    $region9: #{tpu_custom_call.1} parent=1 // pred_fallthru
      _
    // Predicated region
    $region10: #{tpu_custom_call.1} parent=1 // pred_check
      _
    $region11: #{tpu_custom_call.1} parent=1 // pred_check_branch
      %44 = sbr.rel (0) target = $region13
    $region12: #{tpu_custom_call.1} parent=1 // pred_region
      _
    $region13: #{tpu_custom_call.1} parent=1 // pred_fallthru
      _
    // Predicated region
    $region14: #{tpu_custom_call.1} parent=1 // pred_check
      _
    $region15: #{tpu_custom_call.1} parent=1 // pred_check_branch
      %46 = sbr.rel (0) target = $region17
    $region16: #{tpu_custom_call.1} parent=1 // pred_region
      %s48 = ssub.s32 256, 256
      %49 = vsyncadd [#allocation3], %s48
      %s50 = sshll.u32 [#allocation2], 4
      %s51 = int_to_ptr.vmem [resolvable:$true] %s50
      %56 = dma.hbm_to_vmem [thread:$0]  %s3, 256, %s51, [#allocation3], 128, 128, 8
    $region17: #{tpu_custom_call.1} parent=1 // pred_fallthru
      _
    // Predicated region
    $region18: #{tpu_custom_call.1} parent=1 // pred_check
      _
    $region19: #{tpu_custom_call.1} parent=1 // pred_check_branch
      %58 = sbr.rel (0) target = $region21
    $region20: #{tpu_custom_call.1} parent=1 // pred_region
      %s60 = ssub.s32 256, 256
      %61 = vsyncadd [#allocation6], %s60
      %s62 = sshll.u32 [#allocation5], 4
      %s63 = int_to_ptr.vmem [resolvable:$true] %s62
      %68 = dma.hbm_to_vmem [thread:$0]  %s4, 256, %s63, [#allocation6], 128, 128, 8
    $region21: #{tpu_custom_call.1} parent=1 // pred_fallthru
      _
    // Predicated region
    $region22: #{tpu_custom_call.1} parent=1 // pred_check
      _
    $region23: #{tpu_custom_call.1} parent=1 // pred_check_branch
      %70 = sbr.rel (0) target = $region25
    $region24: #{tpu_custom_call.1} parent=1 // pred_region
      _
    $region25: #{tpu_custom_call.1} parent=1 // pred_fallthru
      _
    // Predicated region
    $region26: #{tpu_custom_call.1} parent=1 // pred_check
      _
    $region27: #{tpu_custom_call.1} parent=1 // pred_check_branch
      %72 = sbr.rel (0) target = $region29
    $region28: #{tpu_custom_call.1} parent=1 // pred_region
      %s74 = ssub.s32 16, 16
      %75 = vsyncadd [#allocation6], %s74
      %s77 = sshll.u32 [#allocation7], 4
      %s78 = int_to_ptr.vmem [resolvable:$true] %s77
      %80 = dma.hbm_to_vmem [thread:$0]  %s6, 16, %s78, [#allocation6]
    $region29: #{tpu_custom_call.1} parent=1 // pred_fallthru
      _
    // Predicated region
    $region30: #{tpu_custom_call.1} parent=1 // pred_check
      _
    $region31: #{tpu_custom_call.1} parent=1 // pred_check_branch
      %82 = sbr.rel (0) target = $region33
    $region32: #{tpu_custom_call.1} parent=1 // pred_region
      %s84 = ssub.s32 256, 256
      %85 = vsyncadd [#allocation9], %s84
      %s86 = sshll.u32 [#allocation8], 4
      %s87 = int_to_ptr.vmem [resolvable:$true] %s86
      %92 = dma.hbm_to_vmem [thread:$0]  %s7, 256, %s87, [#allocation9], 64, 64, 4
    $region33: #{tpu_custom_call.1} parent=1 // pred_fallthru
      _
    // Predicated region
    $region34: #{tpu_custom_call.1} parent=1 // pred_check
      _
    $region35: #{tpu_custom_call.1} parent=1 // pred_check_branch
      %94 = sbr.rel (0) target = $region37
    $region36: #{tpu_custom_call.1} parent=1 // pred_region
      %s96 = ssub.s32 16, 16
      %97 = vsyncadd [#allocation9], %s96
      %s99 = sshll.u32 [#allocation10], 4
      %s100 = int_to_ptr.vmem [resolvable:$true] %s99
      %102 = dma.hbm_to_vmem [thread:$0]  %s8, 16, %s100, [#allocation9]
    $region37: #{tpu_custom_call.1} parent=1 // pred_fallthru
      _
    // Predicated region
    $region38: #{tpu_custom_call.1} parent=1 // pred_check
      _
    $region39: #{tpu_custom_call.1} parent=1 // pred_check_branch
      %104 = sbr.rel (0) target = $region41
    $region40: #{tpu_custom_call.1} parent=1 // pred_region
      _
    $region41: #{tpu_custom_call.1} parent=1 // pred_fallthru
      _
    // Predicated region
    $region42: #{tpu_custom_call.1} parent=1 // pred_check
      _
    $region43: #{tpu_custom_call.1} parent=1 // pred_check_branch
      %106 = sbr.rel (0) target = $region45
    $region44: #{tpu_custom_call.1} parent=1 // pred_region
      %s108 = ssub.s32 16, 16
      %109 = vsyncadd [#allocation12], %s108
      %s111 = sshll.u32 [#allocation11], 4
      %s112 = int_to_ptr.vmem [resolvable:$true] %s111
      %114 = dma.hbm_to_vmem [thread:$0]  %s10, 16, %s112, [#allocation12]
    $region45: #{tpu_custom_call.1} parent=1 // pred_fallthru
      _
    // Predicated region
    $region46: #{tpu_custom_call.1} parent=1 // pred_check
      _
    $region47: #{tpu_custom_call.1} parent=1 // pred_check_branch
      %116 = sbr.rel (0) target = $region49
    $region48: #{tpu_custom_call.1} parent=1 // pred_region
      %s118 = ssub.s32 256, 256
      %119 = vsyncadd [#allocation12], %s118
      %s120 = sshll.u32 [#allocation13], 4
      %s121 = int_to_ptr.vmem [resolvable:$true] %s120
      %126 = dma.hbm_to_vmem [thread:$0]  %s11, 256, %s121, [#allocation12], 64, 64, 4
    $region49: #{tpu_custom_call.1} parent=1 // pred_fallthru
      _
    // Predicated region
    $region50: #{tpu_custom_call.1} parent=1 // pred_check
      _
    $region51: #{tpu_custom_call.1} parent=1 // pred_check_branch
      %128 = sbr.rel (0) target = $region53
    $region52: #{tpu_custom_call.1} parent=1 // pred_region
      %s130 = ssub.s32 16, 16
      %131 = vsyncadd [#allocation15], %s130
      %s133 = sshll.u32 [#allocation14], 4
      %s134 = int_to_ptr.vmem [resolvable:$true] %s133
      %136 = dma.hbm_to_vmem [thread:$0]  %s12, 16, %s134, [#allocation15]
    $region53: #{tpu_custom_call.1} parent=1 // pred_fallthru
      _
    // Predicated region
    $region54: #{tpu_custom_call.1} parent=1 // pred_check
      _
    $region55: #{tpu_custom_call.1} parent=1 // pred_check_branch
      %138 = sbr.rel (0) target = $region57
    $region56: #{tpu_custom_call.1} parent=1 // pred_region
      _
    $region57: #{tpu_custom_call.1} parent=1 // pred_fallthru
      _
    // Predicated region
    $region58: #{tpu_custom_call.1} parent=1 // pred_check
      _
    $region59: #{tpu_custom_call.1} parent=1 // pred_check_branch
      %140 = sbr.rel (0) target = $region61
    $region60: #{tpu_custom_call.1} parent=1 // pred_region
      %s142 = ssub.s32 16, 16
      %143 = vsyncadd [#allocation15], %s142
      %s145 = sshll.u32 [#allocation16], 4
      %s146 = int_to_ptr.vmem [resolvable:$true] %s145
      %148 = dma.hbm_to_vmem [thread:$0]  %s14, 16, %s146, [#allocation15]
    $region61: #{tpu_custom_call.1} parent=1 // pred_fallthru
      _
    // Predicated region
    $region62: #{tpu_custom_call.1} parent=1 // pred_check
      _
    $region63: #{tpu_custom_call.1} parent=1 // pred_check_branch
      %150 = sbr.rel (0) target = $region65
    $region64: #{tpu_custom_call.1} parent=1 // pred_region
      %s152 = ssub.s32 256, 256
      %153 = vsyncadd [#allocation18], %s152
      %s154 = sshll.u32 [#allocation17], 4
      %s155 = int_to_ptr.vmem [resolvable:$true] %s154
      %160 = dma.hbm_to_vmem [thread:$0]  %s15, 256, %s155, [#allocation18], 64, 64, 4
    $region65: #{tpu_custom_call.1} parent=1 // pred_fallthru
      _
    // Predicated region
    $region66: #{tpu_custom_call.1} parent=1 // pred_check
      _
    $region67: #{tpu_custom_call.1} parent=1 // pred_check_branch
      %162 = sbr.rel (0) target = $region69
    $region68: #{tpu_custom_call.1} parent=1 // pred_region
      %s164 = ssub.s32 16, 16
      %165 = vsyncadd [#allocation18], %s164
      %s167 = sshll.u32 [#allocation19], 4
      %s168 = int_to_ptr.vmem [resolvable:$true] %s167
      %170 = dma.hbm_to_vmem [thread:$0]  %s16, 16, %s168, [#allocation18]
    $region69: #{tpu_custom_call.1} parent=1 // pred_fallthru
      _
    // Predicated region
    $region70: #{tpu_custom_call.1} parent=1 // pred_check
      _
    $region71: #{tpu_custom_call.1} parent=1 // pred_check_branch
      %172 = sbr.rel (0) target = $region73
    $region72: #{tpu_custom_call.1} parent=1 // pred_region
      _
    $region73: #{tpu_custom_call.1} parent=1 // pred_fallthru
      _
    // Predicated region
    $region74: #{tpu_custom_call.1} parent=1 // pred_check
      _
    $region75: #{tpu_custom_call.1} parent=1 // pred_check_branch
      %174 = sbr.rel (0) target = $region77
    $region76: #{tpu_custom_call.1} parent=1 // pred_region
      _
    $region77: #{tpu_custom_call.1} parent=1 // pred_fallthru
      _
    // Predicated region
    $region78: #{tpu_custom_call.1} parent=1 // pred_check
      _
    $region79: #{tpu_custom_call.1} parent=1 // pred_check_branch
      %176 = sbr.rel (0) target = $region81
    $region80: #{tpu_custom_call.1} parent=1 // pred_region
      _
    $region81: #{tpu_custom_call.1} parent=1 // pred_fallthru
      _
    // Predicated region
    $region82: #{tpu_custom_call.1} parent=1 // pred_check
      _
    $region83: #{tpu_custom_call.1} parent=1 // pred_check_branch
      %178 = sbr.rel (0) target = $region85
    $region84: #{tpu_custom_call.1} parent=1 // pred_region
      _
    $region85: #{tpu_custom_call.1} parent=1 // pred_fallthru
      _
    // Predicated region
    $region86: #{tpu_custom_call.1} parent=1 // pred_check
      _
    $region87: #{tpu_custom_call.1} parent=1 // pred_check_branch
      %180 = sbr.rel (0) target = $region89
    $region88: #{tpu_custom_call.1} parent=1 // pred_region
      _
    $region89: #{tpu_custom_call.1} parent=1 // pred_fallthru
      _
    // Predicated region
    $region90: #{tpu_custom_call.1} parent=1 // pred_check
      _
    $region91: #{tpu_custom_call.1} parent=1 // pred_check_branch
      %182 = sbr.rel (0) target = $region93
    $region92: #{tpu_custom_call.1} parent=1 // pred_region
      _
    $region93: #{tpu_custom_call.1} parent=1 // pred_fallthru
      _
    // Predicated region
    $region94: #{tpu_custom_call.1} parent=1 // pred_check
      _
    $region95: #{tpu_custom_call.1} parent=1 // pred_check_branch
      %184 = sbr.rel (0) target = $region97
    $region96: #{tpu_custom_call.1} parent=1 // pred_region
      _
    $region97: #{tpu_custom_call.1} parent=1 // pred_fallthru
      _
    // Predicated region
    $region98: #{tpu_custom_call.1} parent=1 // pred_check
      _
    $region99: #{tpu_custom_call.1} parent=1 // pred_check_branch
      %186 = sbr.rel (0) target = $region101
    $region100: #{tpu_custom_call.1} parent=1 // pred_region
      _
    $region101: #{tpu_custom_call.1} parent=1 // pred_fallthru
      _
    // Predicated region
    $region102: #{tpu_custom_call.1} parent=1 // pred_check
      _
    $region103: #{tpu_custom_call.1} parent=1 // pred_check_branch
      %188 = sbr.rel (0) target = $region105
    $region104: #{tpu_custom_call.1} parent=1 // pred_region
      _
    $region105: #{tpu_custom_call.1} parent=1 // pred_fallthru
      _
    // Predicated region
    $region106: #{tpu_custom_call.1} parent=1 // pred_check
      _
    $region107: #{tpu_custom_call.1} parent=1 // pred_check_branch
      %190 = sbr.rel (0) target = $region109
    $region108: #{tpu_custom_call.1} parent=1 // pred_region
      _
    $region109: #{tpu_custom_call.1} parent=1 // pred_fallthru
      _
    // Predicated region
    $region110: #{tpu_custom_call.1} parent=1 // pred_check
      _
    $region111: #{tpu_custom_call.1} parent=1 // pred_check_branch
      %192 = sbr.rel (0) target = $region113
    $region112: #{tpu_custom_call.1} parent=1 // pred_region
      %193 = dma.done [#allocation3], 256
    $region113: #{tpu_custom_call.1} parent=1 // pred_fallthru
      _
    // Predicated region
    $region114: #{tpu_custom_call.1} parent=1 // pred_check
      _
    $region115: #{tpu_custom_call.1} parent=1 // pred_check_branch
      %195 = sbr.rel (0) target = $region117
    $region116: #{tpu_custom_call.1} parent=1 // pred_region
      %196 = dma.done [#allocation6], 256
    $region117: #{tpu_custom_call.1} parent=1 // pred_fallthru
      _
    // Predicated region
    $region118: #{tpu_custom_call.1} parent=1 // pred_check
      _
    $region119: #{tpu_custom_call.1} parent=1 // pred_check_branch
      %198 = sbr.rel (0) target = $region121
    $region120: #{tpu_custom_call.1} parent=1 // pred_region
      %199 = dma.done [#allocation6], 16
    $region121: #{tpu_custom_call.1} parent=1 // pred_fallthru
      _
    // Predicated region
    $region122: #{tpu_custom_call.1} parent=1 // pred_check
      _
    $region123: #{tpu_custom_call.1} parent=1 // pred_check_branch
      %201 = sbr.rel (0) target = $region125
    $region124: #{tpu_custom_call.1} parent=1 // pred_region
      %202 = dma.done [#allocation9], 256
    $region125: #{tpu_custom_call.1} parent=1 // pred_fallthru
      _
    // Predicated region
    $region126: #{tpu_custom_call.1} parent=1 // pred_check
      _
    $region127: #{tpu_custom_call.1} parent=1 // pred_check_branch
      %204 = sbr.rel (0) target = $region129
    $region128: #{tpu_custom_call.1} parent=1 // pred_region
      %205 = dma.done [#allocation9], 16
    $region129: #{tpu_custom_call.1} parent=1 // pred_fallthru
      _
    // Predicated region
    $region130: #{tpu_custom_call.1} parent=1 // pred_check
      _
    $region131: #{tpu_custom_call.1} parent=1 // pred_check_branch
      %207 = sbr.rel (0) target = $region133
    $region132: #{tpu_custom_call.1} parent=1 // pred_region
      %208 = dma.done [#allocation12], 16
    $region133: #{tpu_custom_call.1} parent=1 // pred_fallthru
      _
    // Predicated region
    $region134: #{tpu_custom_call.1} parent=1 // pred_check
      _
    $region135: #{tpu_custom_call.1} parent=1 // pred_check_branch
      %210 = sbr.rel (0) target = $region137
    $region136: #{tpu_custom_call.1} parent=1 // pred_region
      %211 = dma.done [#allocation12], 256
    $region137: #{tpu_custom_call.1} parent=1 // pred_fallthru
      _
    // Predicated region
    $region138: #{tpu_custom_call.1} parent=1 // pred_check
      _
    $region139: #{tpu_custom_call.1} parent=1 // pred_check_branch
      %213 = sbr.rel (0) target = $region141
    $region140: #{tpu_custom_call.1} parent=1 // pred_region
      %214 = dma.done [#allocation15], 16
    $region141: #{tpu_custom_call.1} parent=1 // pred_fallthru
      _
    // Predicated region
    $region142: #{tpu_custom_call.1} parent=1 // pred_check
      _
    $region143: #{tpu_custom_call.1} parent=1 // pred_check_branch
      %216 = sbr.rel (0) target = $region145
    $region144: #{tpu_custom_call.1} parent=1 // pred_region
      %217 = dma.done [#allocation15], 16
    $region145: #{tpu_custom_call.1} parent=1 // pred_fallthru
      _
    // Predicated region
    $region146: #{tpu_custom_call.1} parent=1 // pred_check
      _
    $region147: #{tpu_custom_call.1} parent=1 // pred_check_branch
      %219 = sbr.rel (0) target = $region149
    $region148: #{tpu_custom_call.1} parent=1 // pred_region
      %220 = dma.done [#allocation18], 256
    $region149: #{tpu_custom_call.1} parent=1 // pred_fallthru
      _
    // Predicated region
    $region150: #{tpu_custom_call.1} parent=1 // pred_check
      _
    $region151: #{tpu_custom_call.1} parent=1 // pred_check_branch
      %222 = sbr.rel (0) target = $region153
    $region152: #{tpu_custom_call.1} parent=1 // pred_region
      %223 = dma.done [#allocation18], 16
    $region153: #{tpu_custom_call.1} parent=1 // pred_fallthru
      _
    %v225 = vld [vmem:[%s0] sm:$0xff]
    %v226 = vld [vmem:[%s0 + $0x8] sm:$0xff]
    %v227 = vld [vmem:[%s1] sm:$0xff]
    %v228 = vld [vmem:[%s1 + $0x8] sm:$0xff]
    %v229 = vpack.c.bf16 %v226, %v225
    %v230 = vld [vmem:[%s5] sm:$0xf]
    %v231 = vld [vmem:[%s5 + $0x4] sm:$0xf]
    %v232 = vld [vmem:[%s5 + $0x8] sm:$0xf]
    %v233 = vld [vmem:[%s5 + $0xc] sm:$0xf]
    %v234 = vld [vmem:[#allocation7] sm:$0x1]
    %v236 = vlaneseq
    %v237 = vshrl.u32 %v236, 7
    %v238 = vsub.s32 0, %v237
    %v239 = vrot.slane %v234, %v238
    %v245 = vunpack.c.l.b16 %v230
    %v246 = vunpack.c.l.b16 %v231
    %v247 = vunpack.c.l.b16 %v232
    %v248 = vunpack.c.l.b16 %v233
    %v249 = vpack.c.b16 %v246, %v245
    %v250 = vpack.c.b16 %v248, %v247
    %vm253 = vcmask 261120
    %v255 = vsel %vm253, %v229, 0
    %257 = vmatprep.subr.bf16.mxu0 0
    %258 = vmatpush1.bf16.msra.mxu0 %v249
    %259 = vmatprep.subr.bf16.mxu0 0
    %260 = vmatpush1.bf16.msra.mxu0 %v250
    %261 = vmatprep.subr.bf16.mxu0 0
    %262 = vmatpush1.bf16.msra.mxu0 0
    %263 = vmatprep.subr.bf16.mxu0 0
    %264 = vmatpush1.bf16.msra.mxu0 0
    %265 = vmatprep.subr.bf16.mxu0 0
    %266 = vmatpush1.bf16.msra.mxu0 0
    %267 = vmatprep.subr.bf16.mxu0 0
    %268 = vmatpush1.bf16.msra.mxu0 0
    %269 = vmatprep.subr.bf16.mxu0 0
    %270 = vmatpush1.bf16.msra.mxu0 0
    %271 = vmatprep.subr.bf16.mxu0 0
    %272 = vmatpush1.bf16.msra.mxu0 0
    %273 = vmatprep.subr.bf16.mxu0 0
    %274 = vmatpush1.bf16.msra.mxu0 0
    %275 = vmatprep.subr.bf16.mxu0 0
    %276 = vmatpush1.bf16.msra.mxu0 0
    %277 = vmatprep.subr.bf16.mxu0 0
    %278 = vmatpush1.bf16.msra.mxu0 0
    %279 = vmatprep.subr.bf16.mxu0 0
    %280 = vmatpush1.bf16.msra.mxu0 0
    %281 = vmatprep.subr.bf16.mxu0 0
    %282 = vmatpush1.bf16.msra.mxu0 0
    %283 = vmatprep.subr.bf16.mxu0 0
    %284 = vmatpush1.bf16.msra.mxu0 0
    %285 = vmatprep.subr.bf16.mxu0 0
    %286 = vmatpush1.bf16.msra.mxu0 0
    %287 = vmatprep.subr.bf16.mxu0 0
    %288 = vmatpush1.bf16.msra.mxu0 0
    %289 = vmatprep.mubr.bf16.mxu0 0
    %290 = vmatmul.mubr.bf16.gmra.mrb[0].mxu0 %v255
    %v291 = vpop.f32.mrb[0].mxu0
    %v292 = vadd.f32 %v239, %v291
    %v293 = vpop.f32.mrb[0].mxu0
    %v294 = vpop.f32.mrb[0].mxu0
    %v295 = vadd.f32 %v239, %v294
    %v296 = vpop.f32.mrb[0].mxu0
    %297 = vdwg.mxu0
    %v298 = vld [vmem:[%s2] sm:$0xff]
    %v299 = vld [vmem:[%s2 + $0x8] sm:$0xff]
    %v300 = vld [vmem:[#allocation10] sm:$0x1]
    %v301 = vpack.c.bf16 %v295, %v292
    %303 = vrot.lane.b32.xlu0 %v301, 96
    %v304 = vpop.permute.xlu0 %303
    %vm305 = vcmask 64512
    %v307 = vsel %vm305, %v301, 0
    %v310 = vsel %vm305, %v304, 0
    %312 = vmatprep.subr.bf16.mxu0 0
    %313 = vmatpush1.bf16.xpose.msra.mxu0 %v310
    %314 = vmatprep.subr.bf16.mxu0 0
    %315 = vmatpush1.bf16.xpose.msra.mxu0 0
    %316 = vmatprep.subr.bf16.mxu0 0
    %317 = vmatpush1.bf16.xpose.msra.mxu0 0
    %318 = vmatprep.subr.bf16.mxu0 0
    %319 = vmatpush1.bf16.xpose.msra.mxu0 0
    %320 = vmatprep.subr.bf16.mxu0 0
    %321 = vmatpush1.bf16.xpose.msra.mxu0 0
    %322 = vmatprep.subr.bf16.mxu0 0
    %323 = vmatpush1.bf16.xpose.msra.mxu0 0
    %324 = vmatprep.subr.bf16.mxu0 0
    %325 = vmatpush1.bf16.xpose.msra.mxu0 0
    %326 = vmatprep.subr.bf16.mxu0 0
    %327 = vmatpush1.bf16.xpose.msra.mxu0 0
    %328 = vmatprep.subr.bf16.mxu0 0
    %329 = vmatpush1.bf16.xpose.msra.mxu0 0
    %330 = vmatprep.subr.bf16.mxu0 0
    %331 = vmatpush1.bf16.xpose.msra.mxu0 0
    %332 = vmatprep.subr.bf16.mxu0 0
    %333 = vmatpush1.bf16.xpose.msra.mxu0 0
    %334 = vmatprep.subr.bf16.mxu0 0
    %335 = vmatpush1.bf16.xpose.msra.mxu0 0
    %336 = vmatprep.subr.bf16.mxu0 0
    %337 = vmatpush1.bf16.xpose.msra.mxu0 0
    %338 = vmatprep.subr.bf16.mxu0 0
    %339 = vmatpush1.bf16.xpose.msra.mxu0 0
    %340 = vmatprep.subr.bf16.mxu0 0
    %341 = vmatpush1.bf16.xpose.msra.mxu0 0
    %342 = vmatprep.subr.bf16.mxu0 0
    %343 = vmatpush1.bf16.xpose.msra.mxu0 0
    %344 = vmatprep.mubr.bf16.mxu0 0
    %345 = vmatmul.mubr.bf16.gmra.mrb[0].mxu0 %v307
    %v346 = vpop.f32.mrb[0].mxu0
    %v347 = vadd.f32 %v298, %v346
    %v348 = vpop.f32.mrb[0].mxu0
    %v349 = vpop.f32.mrb[0].mxu0
    %v350 = vadd.f32 %v299, %v349
    %v351 = vpop.f32.mrb[0].mxu0
    %352 = vdwg.mxu0
    %vm353 = vcmask 130048
    %v354 = vsel %vm353, %v347, -inf
    %355 = vmax.xlane.f32.xlu0 %v354
    %v356 = vpop.xlane.xlu0 %355
    %v357 = vsel %vm353, %v350, -inf
    %358 = vmax.xlane.f32.xlu0 %v357
    %v359 = vpop.xlane.xlu0 %358
    %v360 = vsub.f32 %v347, %v356
    %v361 = vsub.f32 %v350, %v359
    %v362 = vmul.f32 %v360, 1.442695
    %v363 = vpow.pop %v362
    %v364 = vmul.f32 %v361, 1.442695
    %v365 = vpow.pop %v364
    %v366 = vsel %vm353, %v363, 0.0
    %367 = vadd.xlane.f32.xlu0 %v366
    %v368 = vpop.xlane.xlu0 %367
    %v369 = vsel %vm353, %v365, 0.0
    %370 = vadd.xlane.f32.xlu0 %v369
    %v371 = vpop.xlane.xlu0 %370
    %v372 = vrcp.pop %v368
    %v373 = vrcp.pop %v371
    %v374 = vmul.f32 %v363, %v372
    %v375 = vmul.f32 %v365, %v373
    %v376 = vpack.c.bf16 %v375, %v374
    %377 = vrot.lane.b32.xlu0 %v301, 64
    %v378 = vpop.permute.xlu0 %377
    %v381 = vsel %vm353, %v376, 0
    %383 = vmatprep.subr.bf16.mxu0 0
    %384 = vmatpush1.bf16.msra.mxu0 %v378
    %385 = vmatprep.subr.bf16.mxu0 0
    %386 = vmatpush1.bf16.msra.mxu0 0
    %387 = vmatprep.subr.bf16.mxu0 0
    %388 = vmatpush1.bf16.msra.mxu0 0
    %389 = vmatprep.subr.bf16.mxu0 0
    %390 = vmatpush1.bf16.msra.mxu0 0
    %391 = vmatprep.subr.bf16.mxu0 0
    %392 = vmatpush1.bf16.msra.mxu0 0
    %393 = vmatprep.subr.bf16.mxu0 0
    %394 = vmatpush1.bf16.msra.mxu0 0
    %395 = vmatprep.subr.bf16.mxu0 0
    %396 = vmatpush1.bf16.msra.mxu0 0
    %397 = vmatprep.subr.bf16.mxu0 0
    %398 = vmatpush1.bf16.msra.mxu0 0
    %399 = vmatprep.subr.bf16.mxu0 0
    %400 = vmatpush1.bf16.msra.mxu0 0
    %401 = vmatprep.subr.bf16.mxu0 0
    %402 = vmatpush1.bf16.msra.mxu0 0
    %403 = vmatprep.subr.bf16.mxu0 0
    %404 = vmatpush1.bf16.msra.mxu0 0
    %405 = vmatprep.subr.bf16.mxu0 0
    %406 = vmatpush1.bf16.msra.mxu0 0
    %407 = vmatprep.subr.bf16.mxu0 0
    %408 = vmatpush1.bf16.msra.mxu0 0
    %409 = vmatprep.subr.bf16.mxu0 0
    %410 = vmatpush1.bf16.msra.mxu0 0
    %411 = vmatprep.subr.bf16.mxu0 0
    %412 = vmatpush1.bf16.msra.mxu0 0
    %413 = vmatprep.subr.bf16.mxu0 0
    %414 = vmatpush1.bf16.msra.mxu0 0
    %415 = vmatprep.mubr.bf16.mxu0 0
    %416 = vmatmul.mubr.bf16.gmra.mrb[0].mxu0 %v381
    %v417 = vpop.f32.mrb[0].mxu0
    %v418 = vadd.f32 0.0, %v417
    %v419 = vpop.f32.mrb[0].mxu0
    %v420 = vpop.f32.mrb[0].mxu0
    %v421 = vadd.f32 0.0, %v420
    %v422 = vpop.f32.mrb[0].mxu0
    %423 = vdwg.mxu0
    %424 = vrot.lane.b32.xlu0 %v301, 120
    %v425 = vpop.permute.xlu0 %424
    %426 = vrot.lane.b32.xlu0 %v301, 88
    %v427 = vpop.permute.xlu0 %426
    %v429 = vsel %vm305, %v425, 0
    %v432 = vsel %vm305, %v427, 0
    %434 = vmatprep.subr.bf16.mxu0 0
    %435 = vmatpush1.bf16.xpose.msra.mxu0 %v432
    %436 = vmatprep.subr.bf16.mxu0 0
    %437 = vmatpush1.bf16.xpose.msra.mxu0 0
    %438 = vmatprep.subr.bf16.mxu0 0
    %439 = vmatpush1.bf16.xpose.msra.mxu0 0
    %440 = vmatprep.subr.bf16.mxu0 0
    %441 = vmatpush1.bf16.xpose.msra.mxu0 0
    %442 = vmatprep.subr.bf16.mxu0 0
    %443 = vmatpush1.bf16.xpose.msra.mxu0 0
    %444 = vmatprep.subr.bf16.mxu0 0
    %445 = vmatpush1.bf16.xpose.msra.mxu0 0
    %446 = vmatprep.subr.bf16.mxu0 0
    %447 = vmatpush1.bf16.xpose.msra.mxu0 0
    %448 = vmatprep.subr.bf16.mxu0 0
    %449 = vmatpush1.bf16.xpose.msra.mxu0 0
    %450 = vmatprep.subr.bf16.mxu0 0
    %451 = vmatpush1.bf16.xpose.msra.mxu0 0
    %452 = vmatprep.subr.bf16.mxu0 0
    %453 = vmatpush1.bf16.xpose.msra.mxu0 0
    %454 = vmatprep.subr.bf16.mxu0 0
    %455 = vmatpush1.bf16.xpose.msra.mxu0 0
    %456 = vmatprep.subr.bf16.mxu0 0
    %457 = vmatpush1.bf16.xpose.msra.mxu0 0
    %458 = vmatprep.subr.bf16.mxu0 0
    %459 = vmatpush1.bf16.xpose.msra.mxu0 0
    %460 = vmatprep.subr.bf16.mxu0 0
    %461 = vmatpush1.bf16.xpose.msra.mxu0 0
    %462 = vmatprep.subr.bf16.mxu0 0
    %463 = vmatpush1.bf16.xpose.msra.mxu0 0
    %464 = vmatprep.subr.bf16.mxu0 0
    %465 = vmatpush1.bf16.xpose.msra.mxu0 0
    %466 = vmatprep.mubr.bf16.mxu0 0
    %467 = vmatmul.mubr.bf16.gmra.mrb[0].mxu0 %v429
    %v468 = vpop.f32.mrb[0].mxu0
    %v469 = vadd.f32 %v298, %v468
    %v470 = vpop.f32.mrb[0].mxu0
    %v471 = vpop.f32.mrb[0].mxu0
    %v472 = vadd.f32 %v299, %v471
    %v473 = vpop.f32.mrb[0].mxu0
    %474 = vdwg.mxu0
    %v475 = vsel %vm353, %v469, -inf
    %476 = vmax.xlane.f32.xlu0 %v475
    %v477 = vpop.xlane.xlu0 %476
    %v478 = vsel %vm353, %v472, -inf
    %479 = vmax.xlane.f32.xlu0 %v478
    %v480 = vpop.xlane.xlu0 %479
    %v481 = vsub.f32 %v469, %v477
    %v482 = vsub.f32 %v472, %v480
    %v483 = vmul.f32 %v481, 1.442695
    %v484 = vpow.pop %v483
    %v485 = vmul.f32 %v482, 1.442695
    %v486 = vpow.pop %v485
    %v487 = vsel %vm353, %v484, 0.0
    %488 = vadd.xlane.f32.xlu0 %v487
    %v489 = vpop.xlane.xlu0 %488
    %v490 = vsel %vm353, %v486, 0.0
    %491 = vadd.xlane.f32.xlu0 %v490
    %v492 = vpop.xlane.xlu0 %491
    %v493 = vrcp.pop %v489
    %v494 = vrcp.pop %v492
    %v495 = vmul.f32 %v484, %v493
    %v496 = vmul.f32 %v486, %v494
    %v497 = vpack.c.bf16 %v496, %v495
    %498 = vrot.lane.b32.xlu0 %v301, 56
    %v499 = vpop.permute.xlu0 %498
    %v502 = vsel %vm353, %v497, 0
    %504 = vmatprep.subr.bf16.mxu0 0
    %505 = vmatpush1.bf16.msra.mxu0 %v499
    %506 = vmatprep.subr.bf16.mxu0 0
    %507 = vmatpush1.bf16.msra.mxu0 0
    %508 = vmatprep.subr.bf16.mxu0 0
    %509 = vmatpush1.bf16.msra.mxu0 0
    %510 = vmatprep.subr.bf16.mxu0 0
    %511 = vmatpush1.bf16.msra.mxu0 0
    %512 = vmatprep.subr.bf16.mxu0 0
    %513 = vmatpush1.bf16.msra.mxu0 0
    %514 = vmatprep.subr.bf16.mxu0 0
    %515 = vmatpush1.bf16.msra.mxu0 0
    %516 = vmatprep.subr.bf16.mxu0 0
    %517 = vmatpush1.bf16.msra.mxu0 0
    %518 = vmatprep.subr.bf16.mxu0 0
    %519 = vmatpush1.bf16.msra.mxu0 0
    %520 = vmatprep.subr.bf16.mxu0 0
    %521 = vmatpush1.bf16.msra.mxu0 0
    %522 = vmatprep.subr.bf16.mxu0 0
    %523 = vmatpush1.bf16.msra.mxu0 0
    %524 = vmatprep.subr.bf16.mxu0 0
    %525 = vmatpush1.bf16.msra.mxu0 0
    %526 = vmatprep.subr.bf16.mxu0 0
    %527 = vmatpush1.bf16.msra.mxu0 0
    %528 = vmatprep.subr.bf16.mxu0 0
    %529 = vmatpush1.bf16.msra.mxu0 0
    %530 = vmatprep.subr.bf16.mxu0 0
    %531 = vmatpush1.bf16.msra.mxu0 0
    %532 = vmatprep.subr.bf16.mxu0 0
    %533 = vmatpush1.bf16.msra.mxu0 0
    %534 = vmatprep.subr.bf16.mxu0 0
    %535 = vmatpush1.bf16.msra.mxu0 0
    %536 = vmatprep.mubr.bf16.mxu0 0
    %537 = vmatmul.mubr.bf16.gmra.mrb[0].mxu0 %v502
    %v538 = vpop.f32.mrb[0].mxu0
    %v539 = vadd.f32 0.0, %v538
    %v540 = vpop.f32.mrb[0].mxu0
    %v541 = vpop.f32.mrb[0].mxu0
    %v542 = vadd.f32 0.0, %v541
    %v543 = vpop.f32.mrb[0].mxu0
    %544 = vdwg.mxu0
    %545 = vrot.lane.b32.xlu0 %v301, 112
    %v546 = vpop.permute.xlu0 %545
    %547 = vrot.lane.b32.xlu0 %v301, 80
    %v548 = vpop.permute.xlu0 %547
    %v550 = vsel %vm305, %v546, 0
    %v553 = vsel %vm305, %v548, 0
    %555 = vmatprep.subr.bf16.mxu0 0
    %556 = vmatpush1.bf16.xpose.msra.mxu0 %v553
    %557 = vmatprep.subr.bf16.mxu0 0
    %558 = vmatpush1.bf16.xpose.msra.mxu0 0
    %559 = vmatprep.subr.bf16.mxu0 0
    %560 = vmatpush1.bf16.xpose.msra.mxu0 0
    %561 = vmatprep.subr.bf16.mxu0 0
    %562 = vmatpush1.bf16.xpose.msra.mxu0 0
    %563 = vmatprep.subr.bf16.mxu0 0
    %564 = vmatpush1.bf16.xpose.msra.mxu0 0
    %565 = vmatprep.subr.bf16.mxu0 0
    %566 = vmatpush1.bf16.xpose.msra.mxu0 0
    %567 = vmatprep.subr.bf16.mxu0 0
    %568 = vmatpush1.bf16.xpose.msra.mxu0 0
    %569 = vmatprep.subr.bf16.mxu0 0
    %570 = vmatpush1.bf16.xpose.msra.mxu0 0
    %571 = vmatprep.subr.bf16.mxu0 0
    %572 = vmatpush1.bf16.xpose.msra.mxu0 0
    %573 = vmatprep.subr.bf16.mxu0 0
    %574 = vmatpush1.bf16.xpose.msra.mxu0 0
    %575 = vmatprep.subr.bf16.mxu0 0
    %576 = vmatpush1.bf16.xpose.msra.mxu0 0
    %577 = vmatprep.subr.bf16.mxu0 0
    %578 = vmatpush1.bf16.xpose.msra.mxu0 0
    %579 = vmatprep.subr.bf16.mxu0 0
    %580 = vmatpush1.bf16.xpose.msra.mxu0 0
    %581 = vmatprep.subr.bf16.mxu0 0
    %582 = vmatpush1.bf16.xpose.msra.mxu0 0
    %583 = vmatprep.subr.bf16.mxu0 0
    %584 = vmatpush1.bf16.xpose.msra.mxu0 0
    %585 = vmatprep.subr.bf16.mxu0 0
    %586 = vmatpush1.bf16.xpose.msra.mxu0 0
    %587 = vmatprep.mubr.bf16.mxu0 0
    %588 = vmatmul.mubr.bf16.gmra.mrb[0].mxu0 %v550
    %v589 = vpop.f32.mrb[0].mxu0
    %v590 = vadd.f32 %v298, %v589
    %v591 = vpop.f32.mrb[0].mxu0
    %v592 = vpop.f32.mrb[0].mxu0
    %v593 = vadd.f32 %v299, %v592
    %v594 = vpop.f32.mrb[0].mxu0
    %595 = vdwg.mxu0
    %v596 = vsel %vm353, %v590, -inf
    %597 = vmax.xlane.f32.xlu0 %v596
    %v598 = vpop.xlane.xlu0 %597
    %v599 = vsel %vm353, %v593, -inf
    %600 = vmax.xlane.f32.xlu0 %v599
    %v601 = vpop.xlane.xlu0 %600
    %v602 = vsub.f32 %v590, %v598
    %v603 = vsub.f32 %v593, %v601
    %v604 = vmul.f32 %v602, 1.442695
    %v605 = vpow.pop %v604
    %v606 = vmul.f32 %v603, 1.442695
    %v607 = vpow.pop %v606
    %v608 = vsel %vm353, %v605, 0.0
    %609 = vadd.xlane.f32.xlu0 %v608
    %v610 = vpop.xlane.xlu0 %609
    %v611 = vsel %vm353, %v607, 0.0
    %612 = vadd.xlane.f32.xlu0 %v611
    %v613 = vpop.xlane.xlu0 %612
    %v614 = vrcp.pop %v610
    %v615 = vrcp.pop %v613
    %v616 = vmul.f32 %v605, %v614
    %v617 = vmul.f32 %v607, %v615
    %v618 = vpack.c.bf16 %v617, %v616
    %619 = vrot.lane.b32.xlu0 %v301, 48
    %v620 = vpop.permute.xlu0 %619
    %v623 = vsel %vm353, %v618, 0
    %625 = vmatprep.subr.bf16.mxu0 0
    %626 = vmatpush1.bf16.msra.mxu0 %v620
    %627 = vmatprep.subr.bf16.mxu0 0
    %628 = vmatpush1.bf16.msra.mxu0 0
    %629 = vmatprep.subr.bf16.mxu0 0
    %630 = vmatpush1.bf16.msra.mxu0 0
    %631 = vmatprep.subr.bf16.mxu0 0
    %632 = vmatpush1.bf16.msra.mxu0 0
    %633 = vmatprep.subr.bf16.mxu0 0
    %634 = vmatpush1.bf16.msra.mxu0 0
    %635 = vmatprep.subr.bf16.mxu0 0
    %636 = vmatpush1.bf16.msra.mxu0 0
    %637 = vmatprep.subr.bf16.mxu0 0
    %638 = vmatpush1.bf16.msra.mxu0 0
    %639 = vmatprep.subr.bf16.mxu0 0
    %640 = vmatpush1.bf16.msra.mxu0 0
    %641 = vmatprep.subr.bf16.mxu0 0
    %642 = vmatpush1.bf16.msra.mxu0 0
    %643 = vmatprep.subr.bf16.mxu0 0
    %644 = vmatpush1.bf16.msra.mxu0 0
    %645 = vmatprep.subr.bf16.mxu0 0
    %646 = vmatpush1.bf16.msra.mxu0 0
    %647 = vmatprep.subr.bf16.mxu0 0
    %648 = vmatpush1.bf16.msra.mxu0 0
    %649 = vmatprep.subr.bf16.mxu0 0
    %650 = vmatpush1.bf16.msra.mxu0 0
    %651 = vmatprep.subr.bf16.mxu0 0
    %652 = vmatpush1.bf16.msra.mxu0 0
    %653 = vmatprep.subr.bf16.mxu0 0
    %654 = vmatpush1.bf16.msra.mxu0 0
    %655 = vmatprep.subr.bf16.mxu0 0
    %656 = vmatpush1.bf16.msra.mxu0 0
    %657 = vmatprep.mubr.bf16.mxu0 0
    %658 = vmatmul.mubr.bf16.gmra.mrb[0].mxu0 %v623
    %v659 = vpop.f32.mrb[0].mxu0
    %v660 = vadd.f32 0.0, %v659
    %v661 = vpop.f32.mrb[0].mxu0
    %v662 = vpop.f32.mrb[0].mxu0
    %v663 = vadd.f32 0.0, %v662
    %v664 = vpop.f32.mrb[0].mxu0
    %665 = vdwg.mxu0
    %666 = vrot.lane.b32.xlu0 %v301, 104
    %v667 = vpop.permute.xlu0 %666
    %668 = vrot.lane.b32.xlu0 %v301, 72
    %v669 = vpop.permute.xlu0 %668
    %v671 = vsel %vm305, %v667, 0
    %v674 = vsel %vm305, %v669, 0
    %676 = vmatprep.subr.bf16.mxu0 0
    %677 = vmatpush1.bf16.xpose.msra.mxu0 %v674
    %678 = vmatprep.subr.bf16.mxu0 0
    %679 = vmatpush1.bf16.xpose.msra.mxu0 0
    %680 = vmatprep.subr.bf16.mxu0 0
    %681 = vmatpush1.bf16.xpose.msra.mxu0 0
    %682 = vmatprep.subr.bf16.mxu0 0
    %683 = vmatpush1.bf16.xpose.msra.mxu0 0
    %684 = vmatprep.subr.bf16.mxu0 0
    %685 = vmatpush1.bf16.xpose.msra.mxu0 0
    %686 = vmatprep.subr.bf16.mxu0 0
    %687 = vmatpush1.bf16.xpose.msra.mxu0 0
    %688 = vmatprep.subr.bf16.mxu0 0
    %689 = vmatpush1.bf16.xpose.msra.mxu0 0
    %690 = vmatprep.subr.bf16.mxu0 0
    %691 = vmatpush1.bf16.xpose.msra.mxu0 0
    %692 = vmatprep.subr.bf16.mxu0 0
    %693 = vmatpush1.bf16.xpose.msra.mxu0 0
    %694 = vmatprep.subr.bf16.mxu0 0
    %695 = vmatpush1.bf16.xpose.msra.mxu0 0
    %696 = vmatprep.subr.bf16.mxu0 0
    %697 = vmatpush1.bf16.xpose.msra.mxu0 0
    %698 = vmatprep.subr.bf16.mxu0 0
    %699 = vmatpush1.bf16.xpose.msra.mxu0 0
    %700 = vmatprep.subr.bf16.mxu0 0
    %701 = vmatpush1.bf16.xpose.msra.mxu0 0
    %702 = vmatprep.subr.bf16.mxu0 0
    %703 = vmatpush1.bf16.xpose.msra.mxu0 0
    %704 = vmatprep.subr.bf16.mxu0 0
    %705 = vmatpush1.bf16.xpose.msra.mxu0 0
    %706 = vmatprep.subr.bf16.mxu0 0
    %707 = vmatpush1.bf16.xpose.msra.mxu0 0
    %708 = vmatprep.mubr.bf16.mxu0 0
    %709 = vmatmul.mubr.bf16.gmra.mrb[0].mxu0 %v671
    %v710 = vpop.f32.mrb[0].mxu0
    %v711 = vadd.f32 %v298, %v710
    %v712 = vpop.f32.mrb[0].mxu0
    %v713 = vpop.f32.mrb[0].mxu0
    %v714 = vadd.f32 %v299, %v713
    %v715 = vpop.f32.mrb[0].mxu0
    %716 = vdwg.mxu0
    %v717 = vsel %vm353, %v711, -inf
    %718 = vmax.xlane.f32.xlu0 %v717
    %v719 = vpop.xlane.xlu0 %718
    %v720 = vsel %vm353, %v714, -inf
    %721 = vmax.xlane.f32.xlu0 %v720
    %v722 = vpop.xlane.xlu0 %721
    %v723 = vsub.f32 %v711, %v719
    %v724 = vsub.f32 %v714, %v722
    %v725 = vmul.f32 %v723, 1.442695
    %v726 = vpow.pop %v725
    %v727 = vmul.f32 %v724, 1.442695
    %v728 = vpow.pop %v727
    %v729 = vsel %vm353, %v726, 0.0
    %730 = vadd.xlane.f32.xlu0 %v729
    %v731 = vpop.xlane.xlu0 %730
    %v732 = vsel %vm353, %v728, 0.0
    %733 = vadd.xlane.f32.xlu0 %v732
    %v734 = vpop.xlane.xlu0 %733
    %v735 = vrcp.pop %v731
    %v736 = vrcp.pop %v734
    %v737 = vmul.f32 %v726, %v735
    %v738 = vmul.f32 %v728, %v736
    %v739 = vpack.c.bf16 %v738, %v737
    %740 = vrot.lane.b32.xlu0 %v301, 40
    %v741 = vpop.permute.xlu0 %740
    %v744 = vsel %vm353, %v739, 0
    %746 = vmatprep.subr.bf16.mxu0 0
    %747 = vmatpush1.bf16.msra.mxu0 %v741
    %748 = vmatprep.subr.bf16.mxu0 0
    %749 = vmatpush1.bf16.msra.mxu0 0
    %750 = vmatprep.subr.bf16.mxu0 0
    %751 = vmatpush1.bf16.msra.mxu0 0
    %752 = vmatprep.subr.bf16.mxu0 0
    %753 = vmatpush1.bf16.msra.mxu0 0
    %754 = vmatprep.subr.bf16.mxu0 0
    %755 = vmatpush1.bf16.msra.mxu0 0
    %756 = vmatprep.subr.bf16.mxu0 0
    %757 = vmatpush1.bf16.msra.mxu0 0
    %758 = vmatprep.subr.bf16.mxu0 0
    %759 = vmatpush1.bf16.msra.mxu0 0
    %760 = vmatprep.subr.bf16.mxu0 0
    %761 = vmatpush1.bf16.msra.mxu0 0
    %762 = vmatprep.subr.bf16.mxu0 0
    %763 = vmatpush1.bf16.msra.mxu0 0
    %764 = vmatprep.subr.bf16.mxu0 0
    %765 = vmatpush1.bf16.msra.mxu0 0
    %766 = vmatprep.subr.bf16.mxu0 0
    %767 = vmatpush1.bf16.msra.mxu0 0
    %768 = vmatprep.subr.bf16.mxu0 0
    %769 = vmatpush1.bf16.msra.mxu0 0
    %770 = vmatprep.subr.bf16.mxu0 0
    %771 = vmatpush1.bf16.msra.mxu0 0
    %772 = vmatprep.subr.bf16.mxu0 0
    %773 = vmatpush1.bf16.msra.mxu0 0
    %774 = vmatprep.subr.bf16.mxu0 0
    %775 = vmatpush1.bf16.msra.mxu0 0
    %776 = vmatprep.subr.bf16.mxu0 0
    %777 = vmatpush1.bf16.msra.mxu0 0
    %778 = vmatprep.mubr.bf16.mxu0 0
    %779 = vmatmul.mubr.bf16.gmra.mrb[0].mxu0 %v744
    %v780 = vpop.f32.mrb[0].mxu0
    %v781 = vadd.f32 0.0, %v780
    %v782 = vpop.f32.mrb[0].mxu0
    %v783 = vpop.f32.mrb[0].mxu0
    %v784 = vadd.f32 0.0, %v783
    %v785 = vpop.f32.mrb[0].mxu0
    %786 = vdwg.mxu0
    %789 = vrot.lane.b32.xlu0 %v539, 8
    %v790 = vpop.permute.xlu0 %789
    %791 = vrot.lane.b32.xlu0 %v542, 8
    %v792 = vpop.permute.xlu0 %791
    %797 = vrot.lane.b32.xlu0 %v660, 16
    %v798 = vpop.permute.xlu0 %797
    %799 = vrot.lane.b32.xlu0 %v663, 16
    %v800 = vpop.permute.xlu0 %799
    %805 = vrot.lane.b32.xlu0 %v781, 24
    %v806 = vpop.permute.xlu0 %805
    %807 = vrot.lane.b32.xlu0 %v784, 24
    %v808 = vpop.permute.xlu0 %807
    %v811 = vsel %vm305, %v418, %v790
    %v812 = vsel %vm305, %v421, %v792
    %v813 = vsel %vm353, %v811, %v798
    %v814 = vsel %vm353, %v812, %v800
    %vm815 = vcmask 195584
    %v816 = vsel %vm815, %v813, %v806
    %v817 = vsel %vm815, %v814, %v808
    %v818 = vpack.c.bf16 %v817, %v816
    %v819 = vld [vmem:[#allocation8] sm:$0xf]
    %v820 = vld [vmem:[#allocation8 + $0x4] sm:$0xf]
    %v821 = vld [vmem:[#allocation8 + $0x8] sm:$0xf]
    %v822 = vld [vmem:[#allocation8 + $0xc] sm:$0xf]
    %v824 = vlaneseq
    %v825 = vshrl.u32 %v824, 7
    %v826 = vsub.s32 0, %v825
    %v827 = vrot.slane %v300, %v826
    %v833 = vunpack.c.l.b16 %v819
    %v834 = vunpack.c.l.b16 %v820
    %v835 = vunpack.c.l.b16 %v821
    %v836 = vunpack.c.l.b16 %v822
    %v837 = vpack.c.b16 %v834, %v833
    %v838 = vpack.c.b16 %v836, %v835
    %v842 = vsel %vm253, %v818, 0
    %844 = vmatprep.subr.bf16.mxu0 0
    %845 = vmatpush1.bf16.msra.mxu0 %v837
    %846 = vmatprep.subr.bf16.mxu0 0
    %847 = vmatpush1.bf16.msra.mxu0 %v838
    %848 = vmatprep.subr.bf16.mxu0 0
    %849 = vmatpush1.bf16.msra.mxu0 0
    %850 = vmatprep.subr.bf16.mxu0 0
    %851 = vmatpush1.bf16.msra.mxu0 0
    %852 = vmatprep.subr.bf16.mxu0 0
    %853 = vmatpush1.bf16.msra.mxu0 0
    %854 = vmatprep.subr.bf16.mxu0 0
    %855 = vmatpush1.bf16.msra.mxu0 0
    %856 = vmatprep.subr.bf16.mxu0 0
    %857 = vmatpush1.bf16.msra.mxu0 0
    %858 = vmatprep.subr.bf16.mxu0 0
    %859 = vmatpush1.bf16.msra.mxu0 0
    %860 = vmatprep.subr.bf16.mxu0 0
    %861 = vmatpush1.bf16.msra.mxu0 0
    %862 = vmatprep.subr.bf16.mxu0 0
    %863 = vmatpush1.bf16.msra.mxu0 0
    %864 = vmatprep.subr.bf16.mxu0 0
    %865 = vmatpush1.bf16.msra.mxu0 0
    %866 = vmatprep.subr.bf16.mxu0 0
    %867 = vmatpush1.bf16.msra.mxu0 0
    %868 = vmatprep.subr.bf16.mxu0 0
    %869 = vmatpush1.bf16.msra.mxu0 0
    %870 = vmatprep.subr.bf16.mxu0 0
    %871 = vmatpush1.bf16.msra.mxu0 0
    %872 = vmatprep.subr.bf16.mxu0 0
    %873 = vmatpush1.bf16.msra.mxu0 0
    %874 = vmatprep.subr.bf16.mxu0 0
    %875 = vmatpush1.bf16.msra.mxu0 0
    %876 = vmatprep.mubr.bf16.mxu0 0
    %877 = vmatmul.mubr.bf16.gmra.mrb[0].mxu0 %v842
    %v878 = vpop.f32.mrb[0].mxu0
    %v879 = vadd.f32 %v827, %v878
    %v880 = vpop.f32.mrb[0].mxu0
    %v881 = vpop.f32.mrb[0].mxu0
    %v882 = vadd.f32 %v827, %v881
    %v883 = vpop.f32.mrb[0].mxu0
    %884 = vdwg.mxu0
    %v885 = vadd.f32 %v879, %v225
    %v886 = vadd.f32 %v882, %v226
    %v887 = vld [vmem:[%s19] sm:$0x1]
    %v888 = vld [vmem:[%s20] sm:$0x1]
    %v889 = vsel %vm253, %v885, 0.0
    %890 = vadd.xlane.f32.xlu0 %v889
    %v891 = vpop.xlane.xlu0 %890
    %v892 = vsel %vm253, %v886, 0.0
    %893 = vadd.xlane.f32.xlu0 %v892
    %v894 = vpop.xlane.xlu0 %893
    %v895 = vrcp.pop 32.0
    %v896 = vmul.f32 %v891, %v895
    %v897 = vmul.f32 %v894, %v895
    %v898 = vsub.f32 %v885, %v896
    %v899 = vsub.f32 %v886, %v897
    %v900 = vmul.f32 %v898, %v898
    %v901 = vmul.f32 %v899, %v899
    %v902 = vsel %vm253, %v900, 0.0
    %903 = vadd.xlane.f32.xlu0 %v902
    %v904 = vpop.xlane.xlu0 %903
    %v905 = vsel %vm253, %v901, 0.0
    %906 = vadd.xlane.f32.xlu0 %v905
    %v907 = vpop.xlane.xlu0 %906
    %v908 = vmul.f32 %v904, %v895
    %v909 = vmul.f32 %v907, %v895
    %v910 = vadd.f32 %v908, 1e-05
    %v911 = vadd.f32 %v909, 1e-05
    %v912 = vrsqrt.pop %v910
    %v913 = vrsqrt.pop %v911
    %v914 = vmul.f32 %v898, %v912
    %v915 = vmul.f32 %v899, %v913
    %v917 = vlaneseq
    %v918 = vshrl.u32 %v917, 7
    %v919 = vsub.s32 0, %v918
    %v920 = vrot.slane %v887, %v919
    %v922 = vmul.f32 %v914, %v920
    %v923 = vmul.f32 %v915, %v920
    %v925 = vlaneseq
    %v926 = vshrl.u32 %v925, 7
    %v927 = vsub.s32 0, %v926
    %v928 = vrot.slane %v888, %v927
    %v930 = vadd.f32 %v922, %v928
    %v931 = vadd.f32 %v923, %v928
    %v932 = vpack.c.bf16 %v931, %v930
    %v933 = vld [vmem:[%s9] sm:$0xf]
    %v934 = vld [vmem:[%s9 + $0x4] sm:$0xf]
    %v935 = vld [vmem:[%s9 + $0x8] sm:$0xf]
    %v936 = vld [vmem:[%s9 + $0xc] sm:$0xf]
    %v937 = vld [vmem:[#allocation11] sm:$0x1]
    %v939 = vlaneseq
    %v940 = vshrl.u32 %v939, 7
    %v941 = vsub.s32 0, %v940
    %v942 = vrot.slane %v937, %v941
    %v948 = vunpack.c.l.b16 %v933
    %v949 = vunpack.c.l.b16 %v934
    %v950 = vunpack.c.l.b16 %v935
    %v951 = vunpack.c.l.b16 %v936
    %v952 = vpack.c.b16 %v949, %v948
    %v953 = vpack.c.b16 %v951, %v950
    %v957 = vsel %vm253, %v932, 0
    %959 = vmatprep.subr.bf16.mxu0 0
    %960 = vmatpush1.bf16.msra.mxu0 %v952
    %961 = vmatprep.subr.bf16.mxu0 0
    %962 = vmatpush1.bf16.msra.mxu0 %v953
    %963 = vmatprep.subr.bf16.mxu0 0
    %964 = vmatpush1.bf16.msra.mxu0 0
    %965 = vmatprep.subr.bf16.mxu0 0
    %966 = vmatpush1.bf16.msra.mxu0 0
    %967 = vmatprep.subr.bf16.mxu0 0
    %968 = vmatpush1.bf16.msra.mxu0 0
    %969 = vmatprep.subr.bf16.mxu0 0
    %970 = vmatpush1.bf16.msra.mxu0 0
    %971 = vmatprep.subr.bf16.mxu0 0
    %972 = vmatpush1.bf16.msra.mxu0 0
    %973 = vmatprep.subr.bf16.mxu0 0
    %974 = vmatpush1.bf16.msra.mxu0 0
    %975 = vmatprep.subr.bf16.mxu0 0
    %976 = vmatpush1.bf16.msra.mxu0 0
    %977 = vmatprep.subr.bf16.mxu0 0
    %978 = vmatpush1.bf16.msra.mxu0 0
    %979 = vmatprep.subr.bf16.mxu0 0
    %980 = vmatpush1.bf16.msra.mxu0 0
    %981 = vmatprep.subr.bf16.mxu0 0
    %982 = vmatpush1.bf16.msra.mxu0 0
    %983 = vmatprep.subr.bf16.mxu0 0
    %984 = vmatpush1.bf16.msra.mxu0 0
    %985 = vmatprep.subr.bf16.mxu0 0
    %986 = vmatpush1.bf16.msra.mxu0 0
    %987 = vmatprep.subr.bf16.mxu0 0
    %988 = vmatpush1.bf16.msra.mxu0 0
    %989 = vmatprep.subr.bf16.mxu0 0
    %990 = vmatpush1.bf16.msra.mxu0 0
    %991 = vmatprep.mubr.bf16.mxu0 0
    %992 = vmatmul.mubr.bf16.gmra.mrb[0].mxu0 %v957
    %v993 = vpop.f32.mrb[0].mxu0
    %v994 = vadd.f32 %v942, %v993
    %v995 = vpop.f32.mrb[0].mxu0
    %v996 = vpop.f32.mrb[0].mxu0
    %v997 = vadd.f32 %v942, %v996
    %v998 = vpop.f32.mrb[0].mxu0
    %999 = vdwg.mxu0
    %v1000 = vpack.c.bf16 %v228, %v227
    %v1001 = vld [vmem:[#allocation13] sm:$0xf]
    %v1002 = vld [vmem:[#allocation13 + $0x4] sm:$0xf]
    %v1003 = vld [vmem:[#allocation13 + $0x8] sm:$0xf]
    %v1004 = vld [vmem:[#allocation13 + $0xc] sm:$0xf]
    %v1005 = vld [vmem:[#allocation14] sm:$0x1]
    %v1007 = vlaneseq
    %v1008 = vshrl.u32 %v1007, 7
    %v1009 = vsub.s32 0, %v1008
    %v1010 = vrot.slane %v1005, %v1009
    %v1016 = vunpack.c.l.b16 %v1001
    %v1017 = vunpack.c.l.b16 %v1002
    %v1018 = vunpack.c.l.b16 %v1003
    %v1019 = vunpack.c.l.b16 %v1004
    %v1020 = vpack.c.b16 %v1017, %v1016
    %v1021 = vpack.c.b16 %v1019, %v1018
    %v1025 = vsel %vm253, %v1000, 0
    %1027 = vmatprep.subr.bf16.mxu0 0
    %1028 = vmatpush1.bf16.msra.mxu0 %v1020
    %1029 = vmatprep.subr.bf16.mxu0 0
    %1030 = vmatpush1.bf16.msra.mxu0 %v1021
    %1031 = vmatprep.subr.bf16.mxu0 0
    %1032 = vmatpush1.bf16.msra.mxu0 0
    %1033 = vmatprep.subr.bf16.mxu0 0
    %1034 = vmatpush1.bf16.msra.mxu0 0
    %1035 = vmatprep.subr.bf16.mxu0 0
    %1036 = vmatpush1.bf16.msra.mxu0 0
    %1037 = vmatprep.subr.bf16.mxu0 0
    %1038 = vmatpush1.bf16.msra.mxu0 0
    %1039 = vmatprep.subr.bf16.mxu0 0
    %1040 = vmatpush1.bf16.msra.mxu0 0
    %1041 = vmatprep.subr.bf16.mxu0 0
    %1042 = vmatpush1.bf16.msra.mxu0 0
    %1043 = vmatprep.subr.bf16.mxu0 0
    %1044 = vmatpush1.bf16.msra.mxu0 0
    %1045 = vmatprep.subr.bf16.mxu0 0
    %1046 = vmatpush1.bf16.msra.mxu0 0
    %1047 = vmatprep.subr.bf16.mxu0 0
    %1048 = vmatpush1.bf16.msra.mxu0 0
    %1049 = vmatprep.subr.bf16.mxu0 0
    %1050 = vmatpush1.bf16.msra.mxu0 0
    %1051 = vmatprep.subr.bf16.mxu0 0
    %1052 = vmatpush1.bf16.msra.mxu0 0
    %1053 = vmatprep.subr.bf16.mxu0 0
    %1054 = vmatpush1.bf16.msra.mxu0 0
    %1055 = vmatprep.subr.bf16.mxu0 0
    %1056 = vmatpush1.bf16.msra.mxu0 0
    %1057 = vmatprep.subr.bf16.mxu0 0
    %1058 = vmatpush1.bf16.msra.mxu0 0
    %1059 = vmatprep.mubr.bf16.mxu0 0
    %1060 = vmatmul.mubr.bf16.gmra.mrb[0].mxu0 %v1025
    %v1061 = vpop.f32.mrb[0].mxu0
    %v1062 = vadd.f32 %v1010, %v1061
    %v1063 = vpop.f32.mrb[0].mxu0
    %v1064 = vpop.f32.mrb[0].mxu0
    %v1065 = vadd.f32 %v1010, %v1064
    %v1066 = vpop.f32.mrb[0].mxu0
    %1067 = vdwg.mxu0
    %v1068 = vld [vmem:[#allocation2] sm:$0xff]
    %v1069 = vld [vmem:[#allocation2 + $0x8] sm:$0xff]
    %v1070 = vld [vmem:[#allocation16] sm:$0x1]
    %v1071 = vpack.c.bf16 %v997, %v994
    %v1072 = vpack.c.bf16 %v1065, %v1062
    %v1074 = vsel %vm305, %v1071, 0
    %v1077 = vsel %vm305, %v1072, 0
    %1079 = vmatprep.subr.bf16.mxu0 0
    %1080 = vmatpush1.bf16.xpose.msra.mxu0 %v1077
    %1081 = vmatprep.subr.bf16.mxu0 0
    %1082 = vmatpush1.bf16.xpose.msra.mxu0 0
    %1083 = vmatprep.subr.bf16.mxu0 0
    %1084 = vmatpush1.bf16.xpose.msra.mxu0 0
    %1085 = vmatprep.subr.bf16.mxu0 0
    %1086 = vmatpush1.bf16.xpose.msra.mxu0 0
    %1087 = vmatprep.subr.bf16.mxu0 0
    %1088 = vmatpush1.bf16.xpose.msra.mxu0 0
    %1089 = vmatprep.subr.bf16.mxu0 0
    %1090 = vmatpush1.bf16.xpose.msra.mxu0 0
    %1091 = vmatprep.subr.bf16.mxu0 0
    %1092 = vmatpush1.bf16.xpose.msra.mxu0 0
    %1093 = vmatprep.subr.bf16.mxu0 0
    %1094 = vmatpush1.bf16.xpose.msra.mxu0 0
    %1095 = vmatprep.subr.bf16.mxu0 0
    %1096 = vmatpush1.bf16.xpose.msra.mxu0 0
    %1097 = vmatprep.subr.bf16.mxu0 0
    %1098 = vmatpush1.bf16.xpose.msra.mxu0 0
    %1099 = vmatprep.subr.bf16.mxu0 0
    %1100 = vmatpush1.bf16.xpose.msra.mxu0 0
    %1101 = vmatprep.subr.bf16.mxu0 0
    %1102 = vmatpush1.bf16.xpose.msra.mxu0 0
    %1103 = vmatprep.subr.bf16.mxu0 0
    %1104 = vmatpush1.bf16.xpose.msra.mxu0 0
    %1105 = vmatprep.subr.bf16.mxu0 0
    %1106 = vmatpush1.bf16.xpose.msra.mxu0 0
    %1107 = vmatprep.subr.bf16.mxu0 0
    %1108 = vmatpush1.bf16.xpose.msra.mxu0 0
    %1109 = vmatprep.subr.bf16.mxu0 0
    %1110 = vmatpush1.bf16.xpose.msra.mxu0 0
    %1111 = vmatprep.mubr.bf16.mxu0 0
    %1112 = vmatmul.mubr.bf16.gmra.mrb[0].mxu0 %v1074
    %v1113 = vpop.f32.mrb[0].mxu0
    %v1114 = vadd.f32 %v1068, %v1113
    %v1115 = vpop.f32.mrb[0].mxu0
    %v1116 = vpop.f32.mrb[0].mxu0
    %v1117 = vadd.f32 %v1069, %v1116
    %v1118 = vpop.f32.mrb[0].mxu0
    %1119 = vdwg.mxu0
    %v1120 = vsel %vm353, %v1114, -inf
    %1121 = vmax.xlane.f32.xlu0 %v1120
    %v1122 = vpop.xlane.xlu0 %1121
    %v1123 = vsel %vm353, %v1117, -inf
    %1124 = vmax.xlane.f32.xlu0 %v1123
    %v1125 = vpop.xlane.xlu0 %1124
    %v1126 = vsub.f32 %v1114, %v1122
    %v1127 = vsub.f32 %v1117, %v1125
    %v1128 = vmul.f32 %v1126, 1.442695
    %v1129 = vpow.pop %v1128
    %v1130 = vmul.f32 %v1127, 1.442695
    %v1131 = vpow.pop %v1130
    %v1132 = vsel %vm353, %v1129, 0.0
    %1133 = vadd.xlane.f32.xlu0 %v1132
    %v1134 = vpop.xlane.xlu0 %1133
    %v1135 = vsel %vm353, %v1131, 0.0
    %1136 = vadd.xlane.f32.xlu0 %v1135
    %v1137 = vpop.xlane.xlu0 %1136
    %v1138 = vrcp.pop %v1134
    %v1139 = vrcp.pop %v1137
    %v1140 = vmul.f32 %v1129, %v1138
    %v1141 = vmul.f32 %v1131, %v1139
    %v1142 = vpack.c.bf16 %v1141, %v1140
    %1144 = vrot.lane.b32.xlu0 %v1072, 96
    %v1145 = vpop.permute.xlu0 %1144
    %v1148 = vsel %vm353, %v1142, 0
    %1150 = vmatprep.subr.bf16.mxu0 0
    %1151 = vmatpush1.bf16.msra.mxu0 %v1145
    %1152 = vmatprep.subr.bf16.mxu0 0
    %1153 = vmatpush1.bf16.msra.mxu0 0
    %1154 = vmatprep.subr.bf16.mxu0 0
    %1155 = vmatpush1.bf16.msra.mxu0 0
    %1156 = vmatprep.subr.bf16.mxu0 0
    %1157 = vmatpush1.bf16.msra.mxu0 0
    %1158 = vmatprep.subr.bf16.mxu0 0
    %1159 = vmatpush1.bf16.msra.mxu0 0
    %1160 = vmatprep.subr.bf16.mxu0 0
    %1161 = vmatpush1.bf16.msra.mxu0 0
    %1162 = vmatprep.subr.bf16.mxu0 0
    %1163 = vmatpush1.bf16.msra.mxu0 0
    %1164 = vmatprep.subr.bf16.mxu0 0
    %1165 = vmatpush1.bf16.msra.mxu0 0
    %1166 = vmatprep.subr.bf16.mxu0 0
    %1167 = vmatpush1.bf16.msra.mxu0 0
    %1168 = vmatprep.subr.bf16.mxu0 0
    %1169 = vmatpush1.bf16.msra.mxu0 0
    %1170 = vmatprep.subr.bf16.mxu0 0
    %1171 = vmatpush1.bf16.msra.mxu0 0
    %1172 = vmatprep.subr.bf16.mxu0 0
    %1173 = vmatpush1.bf16.msra.mxu0 0
    %1174 = vmatprep.subr.bf16.mxu0 0
    %1175 = vmatpush1.bf16.msra.mxu0 0
    %1176 = vmatprep.subr.bf16.mxu0 0
    %1177 = vmatpush1.bf16.msra.mxu0 0
    %1178 = vmatprep.subr.bf16.mxu0 0
    %1179 = vmatpush1.bf16.msra.mxu0 0
    %1180 = vmatprep.subr.bf16.mxu0 0
    %1181 = vmatpush1.bf16.msra.mxu0 0
    %1182 = vmatprep.mubr.bf16.mxu0 0
    %1183 = vmatmul.mubr.bf16.gmra.mrb[0].mxu0 %v1148
    %v1184 = vpop.f32.mrb[0].mxu0
    %v1185 = vadd.f32 0.0, %v1184
    %v1186 = vpop.f32.mrb[0].mxu0
    %v1187 = vpop.f32.mrb[0].mxu0
    %v1188 = vadd.f32 0.0, %v1187
    %v1189 = vpop.f32.mrb[0].mxu0
    %1190 = vdwg.mxu0
    %1192 = vrot.lane.b32.xlu0 %v1071, 120
    %v1193 = vpop.permute.xlu0 %1192
    %1194 = vrot.lane.b32.xlu0 %v1072, 120
    %v1195 = vpop.permute.xlu0 %1194
    %v1197 = vsel %vm305, %v1193, 0
    %v1200 = vsel %vm305, %v1195, 0
    %1202 = vmatprep.subr.bf16.mxu0 0
    %1203 = vmatpush1.bf16.xpose.msra.mxu0 %v1200
    %1204 = vmatprep.subr.bf16.mxu0 0
    %1205 = vmatpush1.bf16.xpose.msra.mxu0 0
    %1206 = vmatprep.subr.bf16.mxu0 0
    %1207 = vmatpush1.bf16.xpose.msra.mxu0 0
    %1208 = vmatprep.subr.bf16.mxu0 0
    %1209 = vmatpush1.bf16.xpose.msra.mxu0 0
    %1210 = vmatprep.subr.bf16.mxu0 0
    %1211 = vmatpush1.bf16.xpose.msra.mxu0 0
    %1212 = vmatprep.subr.bf16.mxu0 0
    %1213 = vmatpush1.bf16.xpose.msra.mxu0 0
    %1214 = vmatprep.subr.bf16.mxu0 0
    %1215 = vmatpush1.bf16.xpose.msra.mxu0 0
    %1216 = vmatprep.subr.bf16.mxu0 0
    %1217 = vmatpush1.bf16.xpose.msra.mxu0 0
    %1218 = vmatprep.subr.bf16.mxu0 0
    %1219 = vmatpush1.bf16.xpose.msra.mxu0 0
    %1220 = vmatprep.subr.bf16.mxu0 0
    %1221 = vmatpush1.bf16.xpose.msra.mxu0 0
    %1222 = vmatprep.subr.bf16.mxu0 0
    %1223 = vmatpush1.bf16.xpose.msra.mxu0 0
    %1224 = vmatprep.subr.bf16.mxu0 0
    %1225 = vmatpush1.bf16.xpose.msra.mxu0 0
    %1226 = vmatprep.subr.bf16.mxu0 0
    %1227 = vmatpush1.bf16.xpose.msra.mxu0 0
    %1228 = vmatprep.subr.bf16.mxu0 0
    %1229 = vmatpush1.bf16.xpose.msra.mxu0 0
    %1230 = vmatprep.subr.bf16.mxu0 0
    %1231 = vmatpush1.bf16.xpose.msra.mxu0 0
    %1232 = vmatprep.subr.bf16.mxu0 0
    %1233 = vmatpush1.bf16.xpose.msra.mxu0 0
    %1234 = vmatprep.mubr.bf16.mxu0 0
    %1235 = vmatmul.mubr.bf16.gmra.mrb[0].mxu0 %v1197
    %v1236 = vpop.f32.mrb[0].mxu0
    %v1237 = vadd.f32 %v1068, %v1236
    %v1238 = vpop.f32.mrb[0].mxu0
    %v1239 = vpop.f32.mrb[0].mxu0
    %v1240 = vadd.f32 %v1069, %v1239
    %v1241 = vpop.f32.mrb[0].mxu0
    %1242 = vdwg.mxu0
    %v1243 = vsel %vm353, %v1237, -inf
    %1244 = vmax.xlane.f32.xlu0 %v1243
    %v1245 = vpop.xlane.xlu0 %1244
    %v1246 = vsel %vm353, %v1240, -inf
    %1247 = vmax.xlane.f32.xlu0 %v1246
    %v1248 = vpop.xlane.xlu0 %1247
    %v1249 = vsub.f32 %v1237, %v1245
    %v1250 = vsub.f32 %v1240, %v1248
    %v1251 = vmul.f32 %v1249, 1.442695
    %v1252 = vpow.pop %v1251
    %v1253 = vmul.f32 %v1250, 1.442695
    %v1254 = vpow.pop %v1253
    %v1255 = vsel %vm353, %v1252, 0.0
    %1256 = vadd.xlane.f32.xlu0 %v1255
    %v1257 = vpop.xlane.xlu0 %1256
    %v1258 = vsel %vm353, %v1254, 0.0
    %1259 = vadd.xlane.f32.xlu0 %v1258
    %v1260 = vpop.xlane.xlu0 %1259
    %v1261 = vrcp.pop %v1257
    %v1262 = vrcp.pop %v1260
    %v1263 = vmul.f32 %v1252, %v1261
    %v1264 = vmul.f32 %v1254, %v1262
    %v1265 = vpack.c.bf16 %v1264, %v1263
    %1266 = vrot.lane.b32.xlu0 %v1072, 88
    %v1267 = vpop.permute.xlu0 %1266
    %v1270 = vsel %vm353, %v1265, 0
    %1272 = vmatprep.subr.bf16.mxu0 0
    %1273 = vmatpush1.bf16.msra.mxu0 %v1267
    %1274 = vmatprep.subr.bf16.mxu0 0
    %1275 = vmatpush1.bf16.msra.mxu0 0
    %1276 = vmatprep.subr.bf16.mxu0 0
    %1277 = vmatpush1.bf16.msra.mxu0 0
    %1278 = vmatprep.subr.bf16.mxu0 0
    %1279 = vmatpush1.bf16.msra.mxu0 0
    %1280 = vmatprep.subr.bf16.mxu0 0
    %1281 = vmatpush1.bf16.msra.mxu0 0
    %1282 = vmatprep.subr.bf16.mxu0 0
    %1283 = vmatpush1.bf16.msra.mxu0 0
    %1284 = vmatprep.subr.bf16.mxu0 0
    %1285 = vmatpush1.bf16.msra.mxu0 0
    %1286 = vmatprep.subr.bf16.mxu0 0
    %1287 = vmatpush1.bf16.msra.mxu0 0
    %1288 = vmatprep.subr.bf16.mxu0 0
    %1289 = vmatpush1.bf16.msra.mxu0 0
    %1290 = vmatprep.subr.bf16.mxu0 0
    %1291 = vmatpush1.bf16.msra.mxu0 0
    %1292 = vmatprep.subr.bf16.mxu0 0
    %1293 = vmatpush1.bf16.msra.mxu0 0
    %1294 = vmatprep.subr.bf16.mxu0 0
    %1295 = vmatpush1.bf16.msra.mxu0 0
    %1296 = vmatprep.subr.bf16.mxu0 0
    %1297 = vmatpush1.bf16.msra.mxu0 0
    %1298 = vmatprep.subr.bf16.mxu0 0
    %1299 = vmatpush1.bf16.msra.mxu0 0
    %1300 = vmatprep.subr.bf16.mxu0 0
    %1301 = vmatpush1.bf16.msra.mxu0 0
    %1302 = vmatprep.subr.bf16.mxu0 0
    %1303 = vmatpush1.bf16.msra.mxu0 0
    %1304 = vmatprep.mubr.bf16.mxu0 0
    %1305 = vmatmul.mubr.bf16.gmra.mrb[0].mxu0 %v1270
    %v1306 = vpop.f32.mrb[0].mxu0
    %v1307 = vadd.f32 0.0, %v1306
    %v1308 = vpop.f32.mrb[0].mxu0
    %v1309 = vpop.f32.mrb[0].mxu0
    %v1310 = vadd.f32 0.0, %v1309
    %v1311 = vpop.f32.mrb[0].mxu0
    %1312 = vdwg.mxu0
    %1313 = vrot.lane.b32.xlu0 %v1071, 112
    %v1314 = vpop.permute.xlu0 %1313
    %1315 = vrot.lane.b32.xlu0 %v1072, 112
    %v1316 = vpop.permute.xlu0 %1315
    %v1318 = vsel %vm305, %v1314, 0
    %v1321 = vsel %vm305, %v1316, 0
    %1323 = vmatprep.subr.bf16.mxu0 0
    %1324 = vmatpush1.bf16.xpose.msra.mxu0 %v1321
    %1325 = vmatprep.subr.bf16.mxu0 0
    %1326 = vmatpush1.bf16.xpose.msra.mxu0 0
    %1327 = vmatprep.subr.bf16.mxu0 0
    %1328 = vmatpush1.bf16.xpose.msra.mxu0 0
    %1329 = vmatprep.subr.bf16.mxu0 0
    %1330 = vmatpush1.bf16.xpose.msra.mxu0 0
    %1331 = vmatprep.subr.bf16.mxu0 0
    %1332 = vmatpush1.bf16.xpose.msra.mxu0 0
    %1333 = vmatprep.subr.bf16.mxu0 0
    %1334 = vmatpush1.bf16.xpose.msra.mxu0 0
    %1335 = vmatprep.subr.bf16.mxu0 0
    %1336 = vmatpush1.bf16.xpose.msra.mxu0 0
    %1337 = vmatprep.subr.bf16.mxu0 0
    %1338 = vmatpush1.bf16.xpose.msra.mxu0 0
    %1339 = vmatprep.subr.bf16.mxu0 0
    %1340 = vmatpush1.bf16.xpose.msra.mxu0 0
    %1341 = vmatprep.subr.bf16.mxu0 0
    %1342 = vmatpush1.bf16.xpose.msra.mxu0 0
    %1343 = vmatprep.subr.bf16.mxu0 0
    %1344 = vmatpush1.bf16.xpose.msra.mxu0 0
    %1345 = vmatprep.subr.bf16.mxu0 0
    %1346 = vmatpush1.bf16.xpose.msra.mxu0 0
    %1347 = vmatprep.subr.bf16.mxu0 0
    %1348 = vmatpush1.bf16.xpose.msra.mxu0 0
    %1349 = vmatprep.subr.bf16.mxu0 0
    %1350 = vmatpush1.bf16.xpose.msra.mxu0 0
    %1351 = vmatprep.subr.bf16.mxu0 0
    %1352 = vmatpush1.bf16.xpose.msra.mxu0 0
    %1353 = vmatprep.subr.bf16.mxu0 0
    %1354 = vmatpush1.bf16.xpose.msra.mxu0 0
    %1355 = vmatprep.mubr.bf16.mxu0 0
    %1356 = vmatmul.mubr.bf16.gmra.mrb[0].mxu0 %v1318
    %v1357 = vpop.f32.mrb[0].mxu0
    %v1358 = vadd.f32 %v1068, %v1357
    %v1359 = vpop.f32.mrb[0].mxu0
    %v1360 = vpop.f32.mrb[0].mxu0
    %v1361 = vadd.f32 %v1069, %v1360
    %v1362 = vpop.f32.mrb[0].mxu0
    %1363 = vdwg.mxu0
    %v1364 = vsel %vm353, %v1358, -inf
    %1365 = vmax.xlane.f32.xlu0 %v1364
    %v1366 = vpop.xlane.xlu0 %1365
    %v1367 = vsel %vm353, %v1361, -inf
    %1368 = vmax.xlane.f32.xlu0 %v1367
    %v1369 = vpop.xlane.xlu0 %1368
    %v1370 = vsub.f32 %v1358, %v1366
    %v1371 = vsub.f32 %v1361, %v1369
    %v1372 = vmul.f32 %v1370, 1.442695
    %v1373 = vpow.pop %v1372
    %v1374 = vmul.f32 %v1371, 1.442695
    %v1375 = vpow.pop %v1374
    %v1376 = vsel %vm353, %v1373, 0.0
    %1377 = vadd.xlane.f32.xlu0 %v1376
    %v1378 = vpop.xlane.xlu0 %1377
    %v1379 = vsel %vm353, %v1375, 0.0
    %1380 = vadd.xlane.f32.xlu0 %v1379
    %v1381 = vpop.xlane.xlu0 %1380
    %v1382 = vrcp.pop %v1378
    %v1383 = vrcp.pop %v1381
    %v1384 = vmul.f32 %v1373, %v1382
    %v1385 = vmul.f32 %v1375, %v1383
    %v1386 = vpack.c.bf16 %v1385, %v1384
    %1387 = vrot.lane.b32.xlu0 %v1072, 80
    %v1388 = vpop.permute.xlu0 %1387
    %v1391 = vsel %vm353, %v1386, 0
    %1393 = vmatprep.subr.bf16.mxu0 0
    %1394 = vmatpush1.bf16.msra.mxu0 %v1388
    %1395 = vmatprep.subr.bf16.mxu0 0
    %1396 = vmatpush1.bf16.msra.mxu0 0
    %1397 = vmatprep.subr.bf16.mxu0 0
    %1398 = vmatpush1.bf16.msra.mxu0 0
    %1399 = vmatprep.subr.bf16.mxu0 0
    %1400 = vmatpush1.bf16.msra.mxu0 0
    %1401 = vmatprep.subr.bf16.mxu0 0
    %1402 = vmatpush1.bf16.msra.mxu0 0
    %1403 = vmatprep.subr.bf16.mxu0 0
    %1404 = vmatpush1.bf16.msra.mxu0 0
    %1405 = vmatprep.subr.bf16.mxu0 0
    %1406 = vmatpush1.bf16.msra.mxu0 0
    %1407 = vmatprep.subr.bf16.mxu0 0
    %1408 = vmatpush1.bf16.msra.mxu0 0
    %1409 = vmatprep.subr.bf16.mxu0 0
    %1410 = vmatpush1.bf16.msra.mxu0 0
    %1411 = vmatprep.subr.bf16.mxu0 0
    %1412 = vmatpush1.bf16.msra.mxu0 0
    %1413 = vmatprep.subr.bf16.mxu0 0
    %1414 = vmatpush1.bf16.msra.mxu0 0
    %1415 = vmatprep.subr.bf16.mxu0 0
    %1416 = vmatpush1.bf16.msra.mxu0 0
    %1417 = vmatprep.subr.bf16.mxu0 0
    %1418 = vmatpush1.bf16.msra.mxu0 0
    %1419 = vmatprep.subr.bf16.mxu0 0
    %1420 = vmatpush1.bf16.msra.mxu0 0
    %1421 = vmatprep.subr.bf16.mxu0 0
    %1422 = vmatpush1.bf16.msra.mxu0 0
    %1423 = vmatprep.subr.bf16.mxu0 0
    %1424 = vmatpush1.bf16.msra.mxu0 0
    %1425 = vmatprep.mubr.bf16.mxu0 0
    %1426 = vmatmul.mubr.bf16.gmra.mrb[0].mxu0 %v1391
    %v1427 = vpop.f32.mrb[0].mxu0
    %v1428 = vadd.f32 0.0, %v1427
    %v1429 = vpop.f32.mrb[0].mxu0
    %v1430 = vpop.f32.mrb[0].mxu0
    %v1431 = vadd.f32 0.0, %v1430
    %v1432 = vpop.f32.mrb[0].mxu0
    %1433 = vdwg.mxu0
    %1434 = vrot.lane.b32.xlu0 %v1071, 104
    %v1435 = vpop.permute.xlu0 %1434
    %1436 = vrot.lane.b32.xlu0 %v1072, 104
    %v1437 = vpop.permute.xlu0 %1436
    %v1439 = vsel %vm305, %v1435, 0
    %v1442 = vsel %vm305, %v1437, 0
    %1444 = vmatprep.subr.bf16.mxu0 0
    %1445 = vmatpush1.bf16.xpose.msra.mxu0 %v1442
    %1446 = vmatprep.subr.bf16.mxu0 0
    %1447 = vmatpush1.bf16.xpose.msra.mxu0 0
    %1448 = vmatprep.subr.bf16.mxu0 0
    %1449 = vmatpush1.bf16.xpose.msra.mxu0 0
    %1450 = vmatprep.subr.bf16.mxu0 0
    %1451 = vmatpush1.bf16.xpose.msra.mxu0 0
    %1452 = vmatprep.subr.bf16.mxu0 0
    %1453 = vmatpush1.bf16.xpose.msra.mxu0 0
    %1454 = vmatprep.subr.bf16.mxu0 0
    %1455 = vmatpush1.bf16.xpose.msra.mxu0 0
    %1456 = vmatprep.subr.bf16.mxu0 0
    %1457 = vmatpush1.bf16.xpose.msra.mxu0 0
    %1458 = vmatprep.subr.bf16.mxu0 0
    %1459 = vmatpush1.bf16.xpose.msra.mxu0 0
    %1460 = vmatprep.subr.bf16.mxu0 0
    %1461 = vmatpush1.bf16.xpose.msra.mxu0 0
    %1462 = vmatprep.subr.bf16.mxu0 0
    %1463 = vmatpush1.bf16.xpose.msra.mxu0 0
    %1464 = vmatprep.subr.bf16.mxu0 0
    %1465 = vmatpush1.bf16.xpose.msra.mxu0 0
    %1466 = vmatprep.subr.bf16.mxu0 0
    %1467 = vmatpush1.bf16.xpose.msra.mxu0 0
    %1468 = vmatprep.subr.bf16.mxu0 0
    %1469 = vmatpush1.bf16.xpose.msra.mxu0 0
    %1470 = vmatprep.subr.bf16.mxu0 0
    %1471 = vmatpush1.bf16.xpose.msra.mxu0 0
    %1472 = vmatprep.subr.bf16.mxu0 0
    %1473 = vmatpush1.bf16.xpose.msra.mxu0 0
    %1474 = vmatprep.subr.bf16.mxu0 0
    %1475 = vmatpush1.bf16.xpose.msra.mxu0 0
    %1476 = vmatprep.mubr.bf16.mxu0 0
    %1477 = vmatmul.mubr.bf16.gmra.mrb[0].mxu0 %v1439
    %v1478 = vpop.f32.mrb[0].mxu0
    %v1479 = vadd.f32 %v1068, %v1478
    %v1480 = vpop.f32.mrb[0].mxu0
    %v1481 = vpop.f32.mrb[0].mxu0
    %v1482 = vadd.f32 %v1069, %v1481
    %v1483 = vpop.f32.mrb[0].mxu0
    %1484 = vdwg.mxu0
    %v1485 = vsel %vm353, %v1479, -inf
    %1486 = vmax.xlane.f32.xlu0 %v1485
    %v1487 = vpop.xlane.xlu0 %1486
    %v1488 = vsel %vm353, %v1482, -inf
    %1489 = vmax.xlane.f32.xlu0 %v1488
    %v1490 = vpop.xlane.xlu0 %1489
    %v1491 = vsub.f32 %v1479, %v1487
    %v1492 = vsub.f32 %v1482, %v1490
    %v1493 = vmul.f32 %v1491, 1.442695
    %v1494 = vpow.pop %v1493
    %v1495 = vmul.f32 %v1492, 1.442695
    %v1496 = vpow.pop %v1495
    %v1497 = vsel %vm353, %v1494, 0.0
    %1498 = vadd.xlane.f32.xlu0 %v1497
    %v1499 = vpop.xlane.xlu0 %1498
    %v1500 = vsel %vm353, %v1496, 0.0
    %1501 = vadd.xlane.f32.xlu0 %v1500
    %v1502 = vpop.xlane.xlu0 %1501
    %v1503 = vrcp.pop %v1499
    %v1504 = vrcp.pop %v1502
    %v1505 = vmul.f32 %v1494, %v1503
    %v1506 = vmul.f32 %v1496, %v1504
    %v1507 = vpack.c.bf16 %v1506, %v1505
    %1508 = vrot.lane.b32.xlu0 %v1072, 72
    %v1509 = vpop.permute.xlu0 %1508
    %v1512 = vsel %vm353, %v1507, 0
    %1514 = vmatprep.subr.bf16.mxu0 0
    %1515 = vmatpush1.bf16.msra.mxu0 %v1509
    %1516 = vmatprep.subr.bf16.mxu0 0
    %1517 = vmatpush1.bf16.msra.mxu0 0
    %1518 = vmatprep.subr.bf16.mxu0 0
    %1519 = vmatpush1.bf16.msra.mxu0 0
    %1520 = vmatprep.subr.bf16.mxu0 0
    %1521 = vmatpush1.bf16.msra.mxu0 0
    %1522 = vmatprep.subr.bf16.mxu0 0
    %1523 = vmatpush1.bf16.msra.mxu0 0
    %1524 = vmatprep.subr.bf16.mxu0 0
    %1525 = vmatpush1.bf16.msra.mxu0 0
    %1526 = vmatprep.subr.bf16.mxu0 0
    %1527 = vmatpush1.bf16.msra.mxu0 0
    %1528 = vmatprep.subr.bf16.mxu0 0
    %1529 = vmatpush1.bf16.msra.mxu0 0
    %1530 = vmatprep.subr.bf16.mxu0 0
    %1531 = vmatpush1.bf16.msra.mxu0 0
    %1532 = vmatprep.subr.bf16.mxu0 0
    %1533 = vmatpush1.bf16.msra.mxu0 0
    %1534 = vmatprep.subr.bf16.mxu0 0
    %1535 = vmatpush1.bf16.msra.mxu0 0
    %1536 = vmatprep.subr.bf16.mxu0 0
    %1537 = vmatpush1.bf16.msra.mxu0 0
    %1538 = vmatprep.subr.bf16.mxu0 0
    %1539 = vmatpush1.bf16.msra.mxu0 0
    %1540 = vmatprep.subr.bf16.mxu0 0
    %1541 = vmatpush1.bf16.msra.mxu0 0
    %1542 = vmatprep.subr.bf16.mxu0 0
    %1543 = vmatpush1.bf16.msra.mxu0 0
    %1544 = vmatprep.subr.bf16.mxu0 0
    %1545 = vmatpush1.bf16.msra.mxu0 0
    %1546 = vmatprep.mubr.bf16.mxu0 0
    %1547 = vmatmul.mubr.bf16.gmra.mrb[0].mxu0 %v1512
    %v1548 = vpop.f32.mrb[0].mxu0
    %v1549 = vadd.f32 0.0, %v1548
    %v1550 = vpop.f32.mrb[0].mxu0
    %v1551 = vpop.f32.mrb[0].mxu0
    %v1552 = vadd.f32 0.0, %v1551
    %v1553 = vpop.f32.mrb[0].mxu0
    %1554 = vdwg.mxu0
    %1557 = vrot.lane.b32.xlu0 %v1307, 8
    %v1558 = vpop.permute.xlu0 %1557
    %1559 = vrot.lane.b32.xlu0 %v1310, 8
    %v1560 = vpop.permute.xlu0 %1559
    %1565 = vrot.lane.b32.xlu0 %v1428, 16
    %v1566 = vpop.permute.xlu0 %1565
    %1567 = vrot.lane.b32.xlu0 %v1431, 16
    %v1568 = vpop.permute.xlu0 %1567
    %1573 = vrot.lane.b32.xlu0 %v1549, 24
    %v1574 = vpop.permute.xlu0 %1573
    %1575 = vrot.lane.b32.xlu0 %v1552, 24
    %v1576 = vpop.permute.xlu0 %1575
    %v1579 = vsel %vm305, %v1185, %v1558
    %v1580 = vsel %vm305, %v1188, %v1560
    %v1581 = vsel %vm353, %v1579, %v1566
    %v1582 = vsel %vm353, %v1580, %v1568
    %v1583 = vsel %vm815, %v1581, %v1574
    %v1584 = vsel %vm815, %v1582, %v1576
    %v1585 = vpack.c.bf16 %v1584, %v1583
    %v1586 = vld [vmem:[%s13] sm:$0xf]
    %v1587 = vld [vmem:[%s13 + $0x4] sm:$0xf]
    %v1588 = vld [vmem:[%s13 + $0x8] sm:$0xf]
    %v1589 = vld [vmem:[%s13 + $0xc] sm:$0xf]
    %v1591 = vlaneseq
    %v1592 = vshrl.u32 %v1591, 7
    %v1593 = vsub.s32 0, %v1592
    %v1594 = vrot.slane %v1070, %v1593
    %v1600 = vunpack.c.l.b16 %v1586
    %v1601 = vunpack.c.l.b16 %v1587
    %v1602 = vunpack.c.l.b16 %v1588
    %v1603 = vunpack.c.l.b16 %v1589
    %v1604 = vpack.c.b16 %v1601, %v1600
    %v1605 = vpack.c.b16 %v1603, %v1602
    %v1609 = vsel %vm253, %v1585, 0
    %1611 = vmatprep.subr.bf16.mxu0 0
    %1612 = vmatpush1.bf16.msra.mxu0 %v1604
    %1613 = vmatprep.subr.bf16.mxu0 0
    %1614 = vmatpush1.bf16.msra.mxu0 %v1605
    %1615 = vmatprep.subr.bf16.mxu0 0
    %1616 = vmatpush1.bf16.msra.mxu0 0
    %1617 = vmatprep.subr.bf16.mxu0 0
    %1618 = vmatpush1.bf16.msra.mxu0 0
    %1619 = vmatprep.subr.bf16.mxu0 0
    %1620 = vmatpush1.bf16.msra.mxu0 0
    %1621 = vmatprep.subr.bf16.mxu0 0
    %1622 = vmatpush1.bf16.msra.mxu0 0
    %1623 = vmatprep.subr.bf16.mxu0 0
    %1624 = vmatpush1.bf16.msra.mxu0 0
    %1625 = vmatprep.subr.bf16.mxu0 0
    %1626 = vmatpush1.bf16.msra.mxu0 0
    %1627 = vmatprep.subr.bf16.mxu0 0
    %1628 = vmatpush1.bf16.msra.mxu0 0
    %1629 = vmatprep.subr.bf16.mxu0 0
    %1630 = vmatpush1.bf16.msra.mxu0 0
    %1631 = vmatprep.subr.bf16.mxu0 0
    %1632 = vmatpush1.bf16.msra.mxu0 0
    %1633 = vmatprep.subr.bf16.mxu0 0
    %1634 = vmatpush1.bf16.msra.mxu0 0
    %1635 = vmatprep.subr.bf16.mxu0 0
    %1636 = vmatpush1.bf16.msra.mxu0 0
    %1637 = vmatprep.subr.bf16.mxu0 0
    %1638 = vmatpush1.bf16.msra.mxu0 0
    %1639 = vmatprep.subr.bf16.mxu0 0
    %1640 = vmatpush1.bf16.msra.mxu0 0
    %1641 = vmatprep.subr.bf16.mxu0 0
    %1642 = vmatpush1.bf16.msra.mxu0 0
    %1643 = vmatprep.mubr.bf16.mxu0 0
    %1644 = vmatmul.mubr.bf16.gmra.mrb[0].mxu0 %v1609
    %v1645 = vpop.f32.mrb[0].mxu0
    %v1646 = vadd.f32 %v1594, %v1645
    %v1647 = vpop.f32.mrb[0].mxu0
    %v1648 = vpop.f32.mrb[0].mxu0
    %v1649 = vadd.f32 %v1594, %v1648
    %v1650 = vpop.f32.mrb[0].mxu0
    %1651 = vdwg.mxu0
    %v1652 = vadd.f32 %v1646, %v930
    %v1653 = vadd.f32 %v1649, %v931
    %v1654 = vld [vmem:[%s21] sm:$0x1]
    %v1655 = vld [vmem:[%s22] sm:$0x1]
    %v1656 = vsel %vm253, %v1652, 0.0
    %1657 = vadd.xlane.f32.xlu0 %v1656
    %v1658 = vpop.xlane.xlu0 %1657
    %v1659 = vsel %vm253, %v1653, 0.0
    %1660 = vadd.xlane.f32.xlu0 %v1659
    %v1661 = vpop.xlane.xlu0 %1660
    %v1662 = vmul.f32 %v1658, %v895
    %v1663 = vmul.f32 %v1661, %v895
    %v1664 = vsub.f32 %v1652, %v1662
    %v1665 = vsub.f32 %v1653, %v1663
    %v1666 = vmul.f32 %v1664, %v1664
    %v1667 = vmul.f32 %v1665, %v1665
    %v1668 = vsel %vm253, %v1666, 0.0
    %1669 = vadd.xlane.f32.xlu0 %v1668
    %v1670 = vpop.xlane.xlu0 %1669
    %v1671 = vsel %vm253, %v1667, 0.0
    %1672 = vadd.xlane.f32.xlu0 %v1671
    %v1673 = vpop.xlane.xlu0 %1672
    %v1674 = vmul.f32 %v1670, %v895
    %v1675 = vmul.f32 %v1673, %v895
    %v1676 = vadd.f32 %v1674, 1e-05
    %v1677 = vadd.f32 %v1675, 1e-05
    %v1678 = vrsqrt.pop %v1676
    %v1679 = vrsqrt.pop %v1677
    %v1680 = vmul.f32 %v1664, %v1678
    %v1681 = vmul.f32 %v1665, %v1679
    %v1683 = vlaneseq
    %v1684 = vshrl.u32 %v1683, 7
    %v1685 = vsub.s32 0, %v1684
    %v1686 = vrot.slane %v1654, %v1685
    %v1688 = vmul.f32 %v1680, %v1686
    %v1689 = vmul.f32 %v1681, %v1686
    %v1691 = vlaneseq
    %v1692 = vshrl.u32 %v1691, 7
    %v1693 = vsub.s32 0, %v1692
    %v1694 = vrot.slane %v1655, %v1693
    %v1696 = vadd.f32 %v1688, %v1694
    %v1697 = vadd.f32 %v1689, %v1694
    %v1698 = vpack.c.bf16 %v1697, %v1696
    %v1699 = vld [vmem:[#allocation17] sm:$0xf]
    %v1700 = vld [vmem:[#allocation17 + $0x4] sm:$0xf]
    %v1701 = vld [vmem:[#allocation17 + $0x8] sm:$0xf]
    %v1702 = vld [vmem:[#allocation17 + $0xc] sm:$0xf]
    %v1703 = vld [vmem:[#allocation19] sm:$0x1]
    %v1705 = vlaneseq
    %v1706 = vshrl.u32 %v1705, 7
    %v1707 = vsub.s32 0, %v1706
    %v1708 = vrot.slane %v1703, %v1707
    %v1714 = vunpack.c.l.b16 %v1699
    %v1715 = vunpack.c.l.b16 %v1700
    %v1716 = vunpack.c.l.b16 %v1701
    %v1717 = vunpack.c.l.b16 %v1702
    %v1718 = vpack.c.b16 %v1715, %v1714
    %v1719 = vpack.c.b16 %v1717, %v1716
    %v1723 = vsel %vm253, %v1698, 0
    %1725 = vmatprep.subr.bf16.mxu0 0
    %1726 = vmatpush1.bf16.msra.mxu0 %v1718
    %1727 = vmatprep.subr.bf16.mxu0 0
    %1728 = vmatpush1.bf16.msra.mxu0 %v1719
    %1729 = vmatprep.subr.bf16.mxu0 0
    %1730 = vmatpush1.bf16.msra.mxu0 0
    %1731 = vmatprep.subr.bf16.mxu0 0
    %1732 = vmatpush1.bf16.msra.mxu0 0
    %1733 = vmatprep.subr.bf16.mxu0 0
    %1734 = vmatpush1.bf16.msra.mxu0 0
    %1735 = vmatprep.subr.bf16.mxu0 0
    %1736 = vmatpush1.bf16.msra.mxu0 0
    %1737 = vmatprep.subr.bf16.mxu0 0
    %1738 = vmatpush1.bf16.msra.mxu0 0
    %1739 = vmatprep.subr.bf16.mxu0 0
    %1740 = vmatpush1.bf16.msra.mxu0 0
    %1741 = vmatprep.subr.bf16.mxu0 0
    %1742 = vmatpush1.bf16.msra.mxu0 0
    %1743 = vmatprep.subr.bf16.mxu0 0
    %1744 = vmatpush1.bf16.msra.mxu0 0
    %1745 = vmatprep.subr.bf16.mxu0 0
    %1746 = vmatpush1.bf16.msra.mxu0 0
    %1747 = vmatprep.subr.bf16.mxu0 0
    %1748 = vmatpush1.bf16.msra.mxu0 0
    %1749 = vmatprep.subr.bf16.mxu0 0
    %1750 = vmatpush1.bf16.msra.mxu0 0
    %1751 = vmatprep.subr.bf16.mxu0 0
    %1752 = vmatpush1.bf16.msra.mxu0 0
    %1753 = vmatprep.subr.bf16.mxu0 0
    %1754 = vmatpush1.bf16.msra.mxu0 0
    %1755 = vmatprep.subr.bf16.mxu0 0
    %1756 = vmatpush1.bf16.msra.mxu0 0
    %1757 = vmatprep.mubr.bf16.mxu0 0
    %1758 = vmatmul.mubr.bf16.gmra.mrb[0].mxu0 %v1723
    %v1759 = vpop.f32.mrb[0].mxu0
    %v1760 = vadd.f32 %v1708, %v1759
    %v1761 = vpop.f32.mrb[0].mxu0
    %v1762 = vpop.f32.mrb[0].mxu0
    %v1763 = vadd.f32 %v1708, %v1762
    %v1764 = vpop.f32.mrb[0].mxu0
    %1765 = vdwg.mxu0
    %v1766 = vmax.f32 %v1760, 0.0
    %v1767 = vmax.f32 %v1763, 0.0
    %v1768 = vld [vmem:[%s23] sm:$0x1]
    %v1769 = vld [vmem:[%s24] sm:$0x1]
    %vm1770 = vcmask 523264
    %v1771 = vsel %vm1770, %v1766, 0.0
    %1772 = vadd.xlane.f32.xlu0 %v1771
    %v1773 = vpop.xlane.xlu0 %1772
    %v1774 = vsel %vm1770, %v1767, 0.0
    %1775 = vadd.xlane.f32.xlu0 %v1774
    %v1776 = vpop.xlane.xlu0 %1775
    %v1777 = vrcp.pop 64.0
    %v1778 = vmul.f32 %v1773, %v1777
    %v1779 = vmul.f32 %v1776, %v1777
    %v1780 = vsub.f32 %v1766, %v1778
    %v1781 = vsub.f32 %v1767, %v1779
    %v1782 = vmul.f32 %v1780, %v1780
    %v1783 = vmul.f32 %v1781, %v1781
    %v1784 = vsel %vm1770, %v1782, 0.0
    %1785 = vadd.xlane.f32.xlu0 %v1784
    %v1786 = vpop.xlane.xlu0 %1785
    %v1787 = vsel %vm1770, %v1783, 0.0
    %1788 = vadd.xlane.f32.xlu0 %v1787
    %v1789 = vpop.xlane.xlu0 %1788
    %v1790 = vmul.f32 %v1786, %v1777
    %v1791 = vmul.f32 %v1789, %v1777
    %v1792 = vadd.f32 %v1790, 1e-05
    %v1793 = vadd.f32 %v1791, 1e-05
    %v1794 = vrsqrt.pop %v1792
    %v1795 = vrsqrt.pop %v1793
    %v1796 = vmul.f32 %v1780, %v1794
    %v1797 = vmul.f32 %v1781, %v1795
    %v1799 = vlaneseq
    %v1800 = vshrl.u32 %v1799, 7
    %v1801 = vsub.s32 0, %v1800
    %v1802 = vrot.slane %v1768, %v1801
    %v1804 = vmul.f32 %v1796, %v1802
    %v1805 = vmul.f32 %v1797, %v1802
    %v1807 = vlaneseq
    %v1808 = vshrl.u32 %v1807, 7
    %v1809 = vsub.s32 0, %v1808
    %v1810 = vrot.slane %v1769, %v1809
    %v1812 = vadd.f32 %v1804, %v1810
    %v1813 = vadd.f32 %v1805, %v1810
    %v1814 = vld [vmem:[#allocation5] sm:$0xff]
    %v1815 = vld [vmem:[#allocation5 + $0x8] sm:$0xff]
    %v1816 = vmul.f32 %v1812, %v1814
    %v1817 = vmul.f32 %v1813, %v1815
    %v1818 = vpack.c.bf16 %v1817, %v1816
    %v1819 = vld [vmem:[%s17] sm:$0xf]
    %v1820 = vld [vmem:[%s17 + $0x4] sm:$0xf]
    %v1821 = vld [vmem:[%s17 + $0x8] sm:$0xf]
    %v1822 = vld [vmem:[%s17 + $0xc] sm:$0xf]
    %v1823 = vld [vmem:[%s17 + $0x10] sm:$0xf]
    %v1824 = vld [vmem:[%s17 + $0x14] sm:$0xf]
    %v1825 = vld [vmem:[%s17 + $0x18] sm:$0xf]
    %v1826 = vld [vmem:[%s17 + $0x1c] sm:$0xf]
    %v1827 = vld [vmem:[%s18] sm:$0x1]
    %v1829 = vlaneseq
    %v1830 = vshrl.u32 %v1829, 7
    %v1831 = vsub.s32 0, %v1830
    %v1832 = vrot.slane %v1827, %v1831
    %v1842 = vunpack.c.l.b16 %v1819
    %v1843 = vunpack.c.l.b16 %v1820
    %v1844 = vunpack.c.l.b16 %v1821
    %v1845 = vunpack.c.l.b16 %v1822
    %v1846 = vunpack.c.l.b16 %v1823
    %v1847 = vunpack.c.l.b16 %v1824
    %v1848 = vunpack.c.l.b16 %v1825
    %v1849 = vunpack.c.l.b16 %v1826
    %v1850 = vpack.c.b16 %v1843, %v1842
    %v1851 = vpack.c.b16 %v1845, %v1844
    %v1852 = vpack.c.b16 %v1847, %v1846
    %v1853 = vpack.c.b16 %v1849, %v1848
    %v1859 = vsel %vm1770, %v1818, 0
    %1861 = vmatprep.subr.bf16.mxu0 0
    %1862 = vmatpush1.bf16.msra.mxu0 %v1850
    %1863 = vmatprep.subr.bf16.mxu0 0
    %1864 = vmatpush1.bf16.msra.mxu0 %v1851
    %1865 = vmatprep.subr.bf16.mxu0 0
    %1866 = vmatpush1.bf16.msra.mxu0 %v1852
    %1867 = vmatprep.subr.bf16.mxu0 0
    %1868 = vmatpush1.bf16.msra.mxu0 %v1853
    %1869 = vmatprep.subr.bf16.mxu0 0
    %1870 = vmatpush1.bf16.msra.mxu0 0
    %1871 = vmatprep.subr.bf16.mxu0 0
    %1872 = vmatpush1.bf16.msra.mxu0 0
    %1873 = vmatprep.subr.bf16.mxu0 0
    %1874 = vmatpush1.bf16.msra.mxu0 0
    %1875 = vmatprep.subr.bf16.mxu0 0
    %1876 = vmatpush1.bf16.msra.mxu0 0
    %1877 = vmatprep.subr.bf16.mxu0 0
    %1878 = vmatpush1.bf16.msra.mxu0 0
    %1879 = vmatprep.subr.bf16.mxu0 0
    %1880 = vmatpush1.bf16.msra.mxu0 0
    %1881 = vmatprep.subr.bf16.mxu0 0
    %1882 = vmatpush1.bf16.msra.mxu0 0
    %1883 = vmatprep.subr.bf16.mxu0 0
    %1884 = vmatpush1.bf16.msra.mxu0 0
    %1885 = vmatprep.subr.bf16.mxu0 0
    %1886 = vmatpush1.bf16.msra.mxu0 0
    %1887 = vmatprep.subr.bf16.mxu0 0
    %1888 = vmatpush1.bf16.msra.mxu0 0
    %1889 = vmatprep.subr.bf16.mxu0 0
    %1890 = vmatpush1.bf16.msra.mxu0 0
    %1891 = vmatprep.subr.bf16.mxu0 0
    %1892 = vmatpush1.bf16.msra.mxu0 0
    %1893 = vmatprep.mubr.bf16.mxu0 0
    %1894 = vmatmul.mubr.bf16.gmra.mrb[0].mxu0 %v1859
    %v1895 = vpop.f32.mrb[0].mxu0
    %v1896 = vadd.f32 %v1832, %v1895
    %v1897 = vpop.f32.mrb[0].mxu0
    %v1898 = vpop.f32.mrb[0].mxu0
    %v1899 = vadd.f32 %v1832, %v1898
    %v1900 = vpop.f32.mrb[0].mxu0
    %1901 = vdwg.mxu0
    %v1902 = vadd.f32 %v1896, %v1696
    %v1903 = vadd.f32 %v1899, %v1697
    %v1904 = vld [vmem:[%s25] sm:$0x1]
    %v1905 = vld [vmem:[%s26] sm:$0x1]
    %v1906 = vsel %vm253, %v1902, 0.0
    %1907 = vadd.xlane.f32.xlu0 %v1906
    %v1908 = vpop.xlane.xlu0 %1907
    %v1909 = vsel %vm253, %v1903, 0.0
    %1910 = vadd.xlane.f32.xlu0 %v1909
    %v1911 = vpop.xlane.xlu0 %1910
    %v1912 = vmul.f32 %v1908, %v895
    %v1913 = vmul.f32 %v1911, %v895
    %v1914 = vsub.f32 %v1902, %v1912
    %v1915 = vsub.f32 %v1903, %v1913
    %v1916 = vmul.f32 %v1914, %v1914
    %v1917 = vmul.f32 %v1915, %v1915
    %v1918 = vsel %vm253, %v1916, 0.0
    %1919 = vadd.xlane.f32.xlu0 %v1918
    %v1920 = vpop.xlane.xlu0 %1919
    %v1921 = vsel %vm253, %v1917, 0.0
    %1922 = vadd.xlane.f32.xlu0 %v1921
    %v1923 = vpop.xlane.xlu0 %1922
    %v1924 = vmul.f32 %v1920, %v895
    %v1925 = vmul.f32 %v1923, %v895
    %v1926 = vadd.f32 %v1924, 1e-05
    %v1927 = vadd.f32 %v1925, 1e-05
    %v1928 = vrsqrt.pop %v1926
    %v1929 = vrsqrt.pop %v1927
    %v1930 = vmul.f32 %v1914, %v1928
    %v1931 = vmul.f32 %v1915, %v1929
    %v1933 = vlaneseq
    %v1934 = vshrl.u32 %v1933, 7
    %v1935 = vsub.s32 0, %v1934
    %v1936 = vrot.slane %v1904, %v1935
    %v1938 = vmul.f32 %v1930, %v1936
    %v1939 = vmul.f32 %v1931, %v1936
    %v1941 = vlaneseq
    %v1942 = vshrl.u32 %v1941, 7
    %v1943 = vsub.s32 0, %v1942
    %v1944 = vrot.slane %v1905, %v1943
    %v1946 = vadd.f32 %v1938, %v1944
    %v1947 = vadd.f32 %v1939, %v1944
    %v1949 = vrot.slane %v1946, 4
    %1950 = vrot.lane.b32.xlu0 %v1949, 32
    %v1951 = vpop.permute.xlu0 %1950
    %1954 = vrot.lane.b32.xlu0 %v1947, 64
    %v1955 = vpop.permute.xlu0 %1954
    %v1957 = vrot.slane %v1947, 4
    %1958 = vrot.lane.b32.xlu0 %v1957, 96
    %v1959 = vpop.permute.xlu0 %1958
    %v1961 = vsel %vm253, %v1946, %v1951
    %v1962 = vsel %vm1770, %v1961, %v1955
    %vm1963 = vcmask 785408
    %v1964 = vsel %vm1963, %v1962, %v1959
    %1965 = vst [vmem:[#allocation20] sm:$0xf] %v1964
    // Predicated region
    $region154: #{tpu_custom_call.1} parent=1 // pred_check
      _
    $region155: #{tpu_custom_call.1} parent=1 // pred_check_branch
      %1967 = sbr.rel (0) target = $region157
    $region156: #{tpu_custom_call.1} parent=1 // pred_region
      %s1969 = ssub.s32 64, 64
      %1970 = vsyncadd [#allocation4], %s1969
      %s1972 = sshll.u32 [#allocation20], 4
      %s1973 = int_to_ptr.vmem [resolvable:$true] %s1972
      %1975 = dma.vmem_to_hbm [thread:$0]  %s1973, 64, %s27, [#allocation4]
    $region157: #{tpu_custom_call.1} parent=1 // pred_fallthru
      _
    // Predicated region
    $region158: #{tpu_custom_call.1} parent=1 // pred_check
      _
    $region159: #{tpu_custom_call.1} parent=1 // pred_check_branch
      %1977 = sbr.rel (0) target = $region161
    $region160: #{tpu_custom_call.1} parent=1 // pred_region
      %1978 = dma.done [#allocation4], 64
    $region161: #{tpu_custom_call.1} parent=1 // pred_fallthru
      _
    %1979 = vsyncpa [#allocation3], 1
    %1980 = vsyncpa [#allocation6], 1
    %1981 = vsyncpa [#allocation9], 1
    %1982 = vsyncpa [#allocation12], 1
    %1983 = vsyncpa [#allocation15], 1
    %1984 = vsyncpa [#allocation18], 1
    %1985 = vsyncpa [#allocation4], 1

</llo_original>
